<compile_context>
chip_gen: v5e
topology: v5e:2x2
jax: 0.10.0
libtpu: 0.0.40
codegen_flags: <defaults>
</compile_context>

<pallas_src>
import functools

import numpy as np
import jax
import jax.numpy as jnp
from jax import lax
from jax.experimental import pallas as pl
from jax.experimental.pallas import tpu as pltpu


def _round_up(a, b):
    return ((a + b - 1) // b) * b


def _cdiv(a, b):
    return (a + b - 1) // b


def _tpu_core_split():
    """Number of TensorCores a 'parallel' grid axis is sharded across.

    v7x (and megacore v4/v5p) = 2; single-TC v5e/v6e = 1.  Defaults to 1 if
    detection fails (safe: just means no forced grid split)."""
    try:
        kind = jax.devices()[0].device_kind.lower()
    except Exception:
        return 1
    if "v7" in kind or "7x" in kind:
        return 2
    if "v4" in kind or "v5p" in kind:
        return 2
    return 1


# ---------------------------------------------------------------------------
# Pallas kernel: 5 chained MXU matmuls per branch (mu / logsigma), per tile.
# All widths are padded to lane multiples of 128 at build time, so every
# load, bias add, activation and store runs on whole vregs and the output
# stores are full-lane.
# ---------------------------------------------------------------------------
def decx_kernel(x_ref,
                w1_ref, b1_ref, w2_ref, b2_ref, w3_ref, b3_ref,
                w4_ref, b4_ref, w5_ref, b5_ref,
                mu_ref, ls_ref):

    def lrelu(v):
        return jnp.where(v >= 0, v, 0.2 * v)

    def layer(h_bf16, w_ref, b_ref, g):
        # bf16 operands -> single MXU pass, f32 accumulation; bias added in f32.
        y = jnp.dot(h_bf16, w_ref[g], preferred_element_type=jnp.float32)
        return y + b_ref[g]

    x = x_ref[...]                                     # (tm, 128) bf16
    for g, out_ref in ((0, mu_ref), (1, ls_ref)):      # statically unrolled
        h = lrelu(layer(x, w1_ref, b1_ref, g)).astype(jnp.bfloat16)   # fc1
        h = lrelu(layer(h, w2_ref, b2_ref, g)).astype(jnp.bfloat16)   # fc2
        h = lrelu(layer(h, w3_ref, b3_ref, g)).astype(jnp.bfloat16)   # deconv1
        h = lrelu(layer(h, w4_ref, b4_ref, g)).astype(jnp.bfloat16)   # deconv2
        y = jnp.tanh(layer(h, w5_ref, b5_ref, g))                     # deconv3
        out_ref[...] = y.astype(out_ref.dtype)


# ---------------------------------------------------------------------------
# Parameter init (deterministic) mirroring the PyTorch module's layer shapes.
# ---------------------------------------------------------------------------
def init_raw_params(key, enc_dim=32, dec_init_dim=64):
    ks = jax.random.split(key, 20)

    def branch(kk):
        it = iter(kk)
        p = {}
        p["fc1_w"] = jax.random.normal(next(it), (2 * enc_dim, dec_init_dim),
                                       jnp.float32) * 0.1
        p["fc1_b"] = jax.random.normal(next(it), (2 * enc_dim,), jnp.float32) * 0.1
        p["fc2_w"] = jax.random.normal(next(it), (32 * 5, 2 * enc_dim),
                                       jnp.float32) * 0.1
        p["fc2_b"] = jax.random.normal(next(it), (32 * 5,), jnp.float32) * 0.1
        p["dc1_w"] = jax.random.normal(next(it), (32, 16, 2), jnp.float32) * 0.2
        p["dc1_b"] = jax.random.normal(next(it), (16,), jnp.float32) * 0.1
        p["dc2_w"] = jax.random.normal(next(it), (16, 8, 2), jnp.float32) * 0.25
        p["dc2_b"] = jax.random.normal(next(it), (8,), jnp.float32) * 0.1
        p["dc3_w"] = jax.random.normal(next(it), (8, 1, 2), jnp.float32) * 0.35
        p["dc3_b"] = jax.random.normal(next(it), (1,), jnp.float32) * 0.1
        return p

    return {"mu": branch(ks[:10]), "ls": branch(ks[10:])}


# ---------------------------------------------------------------------------
# Offline weight build: deconv-as-matmul matrices per branch, zero-padded to
# lane multiples.  Column convention for conv activations: pos-major
# (index = position*C + channel).  Padded lanes carry zero weights AND zero
# bias, so they stay exactly zero through LReLU and contribute nothing to the
# next layer.
# ---------------------------------------------------------------------------
def _branch_dense_padded(p, n=38):
    C0, C1, C2 = 32, 16, 8
    L0, L1, L2 = 5, 10, 20

    fc1_w = np.asarray(p["fc1_w"], np.float32)   # (64, 64)  (out, in)
    fc1_b = np.asarray(p["fc1_b"], np.float32)
    fc2_w = np.asarray(p["fc2_w"], np.float32)   # (160, 64) (out, in)
    fc2_b = np.asarray(p["fc2_b"], np.float32)
    dc1_w = np.asarray(p["dc1_w"], np.float32)   # (32, 16, 2)
    dc1_b = np.asarray(p["dc1_b"], np.float32)
    dc2_w = np.asarray(p["dc2_w"], np.float32)   # (16, 8, 2)
    dc2_b = np.asarray(p["dc2_b"], np.float32)
    dc3_w = np.asarray(p["dc3_w"], np.float32)   # (8, 1, 2)
    dc3_b = np.asarray(p["dc3_b"], np.float32)

    D = fc1_w.shape[1]            # 64 input features
    H1 = fc1_w.shape[0]           # 64 fc1 outputs
    P_IN = _round_up(D, 128)      # 128
    P_H1 = _round_up(H1, 128)     # 128
    P_H = _round_up(L0 * C0, 128)  # 160 -> 256 (one 256-wide MXU pass)
    P_OUT = _round_up(n, 128)     # 128

    # fc1
    W1 = np.zeros((P_IN, P_H1), np.float32)
    W1[:D, :H1] = fc1_w.T
    B1 = np.zeros((P_H1,), np.float32)
    B1[:H1] = fc1_b

    # fc2, output columns permuted from the PyTorch view(-1, 32, 5)
    # channel-major index (c*5 + j) into position-major (j*32 + c).
    W2 = np.zeros((P_H1, P_H), np.float32)
    B2 = np.zeros((P_H,), np.float32)
    for j in range(L0):
        for c in range(C0):
            W2[:H1, j * C0 + c] = fc2_w[c * L0 + j, :]
            B2[j * C0 + c] = fc2_b[c * L0 + j]

    # deconv1: ConvTranspose1d(32,16,k=2,s=2,p=0): (32,5) -> (16,10)
    W3 = np.zeros((P_H, P_H), np.float32)
    for j in range(L0):
        for c in range(C0):
            for d in range(2):
                m = 2 * j + d
                W3[j * C0 + c, m * C1:(m + 1) * C1] = dc1_w[c, :, d]
    B3 = np.zeros((P_H,), np.float32)
    B3[:L1 * C1] = np.tile(dc1_b, L1)

    # deconv2: ConvTranspose1d(16,8,k=2,s=2,p=0): (16,10) -> (8,20)
    W4 = np.zeros((P_H, P_H), np.float32)
    for j in range(L1):
        for c in range(C1):
            for d in range(2):
                m = 2 * j + d
                W4[j * C1 + c, m * C2:(m + 1) * C2] = dc2_w[c, :, d]
    B4 = np.zeros((P_H,), np.float32)
    B4[:L2 * C2] = np.tile(dc2_b, L2)

    # deconv3: ConvTranspose1d(8,1,k=2,s=2,p=1): (8,20) -> 40 trimmed to n=38;
    # padding folded in by dropping the trimmed positions; output lane-padded.
    W5 = np.zeros((P_H, P_OUT), np.float32)
    for j in range(L2):
        for c in range(C2):
            for d in range(2):
                m = 2 * j + d
                if 1 <= m <= n:
                    W5[j * C2 + c, m - 1] = dc3_w[c, 0, d]
    B5 = np.zeros((P_OUT,), np.float32)
    B5[:n] = dc3_b[0]

    return (W1, B1, W2, B2, W3, B3, W4, B4, W5, B5)


def build_dense_params(raw, n=38):
    mu = _branch_dense_padded(raw["mu"], n=n)
    ls = _branch_dense_padded(raw["ls"], n=n)
    params = []
    for k in range(0, 10, 2):
        W = np.stack([mu[k], ls[k]], axis=0)                       # (2, K, N)
        B = np.stack([mu[k + 1], ls[k + 1]], axis=0)[:, None, :]   # (2, 1, N)
        # Weights in bf16 (single-pass MXU); biases stay f32 (post-accum add).
        params.append(jnp.asarray(W, dtype=jnp.bfloat16))
        params.append(jnp.asarray(B, dtype=jnp.float32))
    return tuple(params)


# ---------------------------------------------------------------------------
# Wrapper: pallas_call over row tiles of the collapsed (M, D) latent input.
# ---------------------------------------------------------------------------
@functools.partial(jax.jit, static_argnames=("n", "tm", "cores"))
def _decx_forward_jit(z, dense_params, *, n, tm, cores):
    D = z.shape[-1]
    zr = z.reshape(-1, D).astype(jnp.bfloat16)     # bf16 input feed
    M = zr.shape[0]

    (W1, B1, W2, B2, W3, B3, W4, B4, W5, B5) = dense_params
    D_pad = W1.shape[1]        # lane-padded input width (128)
    N_out = W5.shape[2]        # lane-padded output width (128)

    if D_pad > D:
        zr = jnp.pad(zr, ((0, 0), (0, D_pad - D)))

    # Row-tile choice: large tiles (amortize ~0.35us/grid-step overhead),
    # multiples of 16 for bf16 sublane packing.  Grid steps are rounded to a
    # multiple of the TensorCore count so a dual-TC chip (v7x) always sees an
    # even grid, while single-TC v5e/v6e get the largest tile with no forced
    # extra step.  Ragged tails are padded (padded rows are wasted but
    # harmless).
    steps = _round_up(max(_cdiv(M, tm), cores), cores)
    tm_use = _round_up(_cdiv(M, steps), 16)
    M_pad = tm_use * steps
    if M_pad > M:
        zr = jnp.pad(zr, ((0, M_pad - M), (0, 0)))

    def w_spec(a):
        return pl.BlockSpec(a.shape, lambda i: (0, 0, 0))   # VMEM-resident

    mu_p, ls_p = pl.pallas_call(
        decx_kernel,
        out_shape=(jax.ShapeDtypeStruct((M_pad, N_out), jnp.float32),
                   jax.ShapeDtypeStruct((M_pad, N_out), jnp.float32)),
        grid_spec=pltpu.PrefetchScalarGridSpec(
            num_scalar_prefetch=0,
            grid=(steps,),
            in_specs=[
                pl.BlockSpec((tm_use, D_pad), lambda i: (i, 0)),
                w_spec(W1), w_spec(B1),
                w_spec(W2), w_spec(B2),
                w_spec(W3), w_spec(B3),
                w_spec(W4), w_spec(B4),
                w_spec(W5), w_spec(B5),
            ],
            out_specs=[pl.BlockSpec((tm_use, N_out), lambda i: (i, 0)),
                       pl.BlockSpec((tm_use, N_out), lambda i: (i, 0))],
        ),
        compiler_params=pltpu.CompilerParams(
            dimension_semantics=("parallel",)),
    )(zr, W1, B1, W2, B2, W3, B3, W4, B4, W5, B5)

    # Lane-dense kernel outputs; slice the real columns out in XLA.
    x_mu = mu_p[:M, :n].reshape(-1, 1, 1, n, 1)
    x_logsigma = ls_p[:M, :n].reshape(-1, 1, 1, n, 1)
    return x_mu, x_logsigma


def decx_forward(z, dense_params, *, n=38, tm=1024):
    return _decx_forward_jit(z, dense_params, n=n, tm=tm,
                             cores=_tpu_core_split())


# ---------------------------------------------------------------------------
# Pure-JAX reference (mirrors the PyTorch forward op-for-op, f32/HIGHEST).
# ---------------------------------------------------------------------------
def decx_reference(z, raw, n=38):
    hp = lax.Precision.HIGHEST
    B = z.shape[0]

    def lrelu(v):
        return jnp.where(v >= 0, v, 0.2 * v)

    def deconv(h, w, b, pad):
        # h: (B, C_in, L); w: (C_in, C_out, k); stride == kernel
        Bq, _, L = h.shape
        C_out, k = w.shape[1], w.shape[2]
        y = jnp.einsum("bcj,cod->bojd", h, w, precision=hp)
        y = y.reshape(Bq, C_out, L * k)
        if pad > 0:
            y = y[:, :, pad:L * k - pad]
        return y + b[None, :, None]

    def branch(p):
        h = z.reshape(B, -1)
        h = lrelu(jnp.dot(h, p["fc1_w"].T, precision=hp) + p["fc1_b"])
        h = lrelu(jnp.dot(h, p["fc2_w"].T, precision=hp) + p["fc2_b"])
        h = h.reshape(B, 32, 5)                                   # view(-1, 32, 5)
        h = lrelu(deconv(h, p["dc1_w"], p["dc1_b"], 0))           # (B, 16, 10)
        h = lrelu(deconv(h, p["dc2_w"], p["dc2_b"], 0))           # (B, 8, 20)
        h = jnp.tanh(deconv(h, p["dc3_w"], p["dc3_b"], 1))        # (B, 1, 38)
        return h.reshape(B, 1, 1, n, 1)

    return branch(raw["mu"]), branch(raw["ls"])


# ---------------------------------------------------------------------------
if __name__ == "__main__":
    enc_dim = 32
    dec_init_dim = 64
    n, w, T = 38, 1, 20
    batch = 16

    key = jax.random.PRNGKey(0)
    k_x, k_p = jax.random.split(key)

    z = jax.random.normal(k_x, (batch, 1, dec_init_dim), jnp.float32)

    raw = init_raw_params(k_p, enc_dim=enc_dim, dec_init_dim=dec_init_dim)
    dense = build_dense_params(raw, n=n)

    x_mu, x_logsigma = decx_forward(z, dense, n=n, tm=1024)
    x_mu = jax.block_until_ready(x_mu)
    x_logsigma = jax.block_until_ready(x_logsigma)

    ref_mu, ref_ls = decx_reference(z, raw, n=n)
    ref_mu = jax.block_until_ready(ref_mu)
    ref_ls = jax.block_until_ready(ref_ls)

    assert x_mu.shape == (batch, 1, 1, n, w), x_mu.shape
    assert x_logsigma.shape == (batch, 1, 1, n, w), x_logsigma.shape
    # Kernel runs bf16 operands / f32 accumulation (per perf guidance); compare
    # against the f32 HIGHEST reference with a correspondingly relaxed tolerance.
    np.testing.assert_allclose(np.asarray(x_mu), np.asarray(ref_mu),
                               rtol=2e-2, atol=2e-2)
    np.testing.assert_allclose(np.asarray(x_logsigma), np.asarray(ref_ls),
                               rtol=2e-2, atol=2e-2)
    print("KERNEL_OK")
</pallas_src>

<mosaic_0001>
module attributes {stable_mosaic.version = 11 : i64} {
  func.func @decx_kernel(%arg0: i32, %arg1: memref<16x128xbf16, #tpu.memory_space<vmem>>, %arg2: memref<2x128x128xbf16, #tpu.memory_space<vmem>>, %arg3: memref<2x1x128xf32, #tpu.memory_space<vmem>>, %arg4: memref<2x128x256xbf16, #tpu.memory_space<vmem>>, %arg5: memref<2x1x256xf32, #tpu.memory_space<vmem>>, %arg6: memref<2x256x256xbf16, #tpu.memory_space<vmem>>, %arg7: memref<2x1x256xf32, #tpu.memory_space<vmem>>, %arg8: memref<2x256x256xbf16, #tpu.memory_space<vmem>>, %arg9: memref<2x1x256xf32, #tpu.memory_space<vmem>>, %arg10: memref<2x256x128xbf16, #tpu.memory_space<vmem>>, %arg11: memref<2x1x128xf32, #tpu.memory_space<vmem>>, %arg12: memref<16x128xf32, #tpu.memory_space<vmem>>, %arg13: memref<16x128xf32, #tpu.memory_space<vmem>>) attributes {dimension_semantics = [#tpu.dimension_semantics<parallel>], iteration_bounds = array<i64: 1>, scalar_prefetch = 0 : i64, scratch_operands = 0 : i64, tpu.core_type = #tpu.core_type<tc>, window_params = [{transform_indices = @transform_0, window_bounds = array<i64: 16, 128>}, {pipeline_mode = #tpu.pipeline_mode<synchronous>, transform_indices = @transform_1, window_bounds = array<i64: 2, 128, 128>}, {pipeline_mode = #tpu.pipeline_mode<synchronous>, transform_indices = @transform_2, window_bounds = array<i64: 2, 1, 128>}, {pipeline_mode = #tpu.pipeline_mode<synchronous>, transform_indices = @transform_3, window_bounds = array<i64: 2, 128, 256>}, {pipeline_mode = #tpu.pipeline_mode<synchronous>, transform_indices = @transform_4, window_bounds = array<i64: 2, 1, 256>}, {pipeline_mode = #tpu.pipeline_mode<synchronous>, transform_indices = @transform_5, window_bounds = array<i64: 2, 256, 256>}, {pipeline_mode = #tpu.pipeline_mode<synchronous>, transform_indices = @transform_6, window_bounds = array<i64: 2, 1, 256>}, {pipeline_mode = #tpu.pipeline_mode<synchronous>, transform_indices = @transform_7, window_bounds = array<i64: 2, 256, 256>}, {pipeline_mode = #tpu.pipeline_mode<synchronous>, transform_indices = @transform_8, window_bounds = array<i64: 2, 1, 256>}, {pipeline_mode = #tpu.pipeline_mode<synchronous>, transform_indices = @transform_9, window_bounds = array<i64: 2, 256, 128>}, {pipeline_mode = #tpu.pipeline_mode<synchronous>, transform_indices = @transform_10, window_bounds = array<i64: 2, 1, 128>}, {transform_indices = @transform_11, window_bounds = array<i64: 16, 128>}, {transform_indices = @transform_12, window_bounds = array<i64: 16, 128>}]} {
    %c0 = arith.constant 0 : index
    %c0_0 = arith.constant 0 : index
    %0 = vector.load %arg1[%c0, %c0_0] : memref<16x128xbf16, #tpu.memory_space<vmem>>, vector<16x128xbf16>
    %c0_1 = arith.constant 0 : index
    %c0_2 = arith.constant 0 : index
    %c0_3 = arith.constant 0 : index
    %1 = vector.load %arg2[%c0_1, %c0_2, %c0_3] : memref<2x128x128xbf16, #tpu.memory_space<vmem>>, vector<1x128x128xbf16>
    %2 = vector.shape_cast %1 : vector<1x128x128xbf16> to vector<128x128xbf16>
    %cst = arith.constant dense<0.000000e+00> : vector<16x128xf32>
    %3 = tpu.matmul %0, %2, %cst {dimension_numbers = #tpu.dot_dimension_numbers<[1], [0], [0], [1], [0, 0, 1, 1], [], []>} : vector<16x128xbf16>, vector<128x128xbf16>, vector<16x128xf32> -> vector<16x128xf32>
    %c0_4 = arith.constant 0 : index
    %c0_5 = arith.constant 0 : index
    %c0_6 = arith.constant 0 : index
    %4 = vector.load %arg3[%c0_4, %c0_5, %c0_6] : memref<2x1x128xf32, #tpu.memory_space<vmem>>, vector<1x1x128xf32>
    %5 = vector.shape_cast %4 : vector<1x1x128xf32> to vector<1x128xf32>
    %6 = vector.broadcast %5 : vector<1x128xf32> to vector<16x128xf32>
    %7 = arith.addf %3, %6 : vector<16x128xf32>
    %cst_7 = arith.constant 0.000000e+00 : f32
    %8 = vector.broadcast %cst_7 : f32 to vector<16x128xf32>
    %9 = arith.cmpf oge, %7, %8 : vector<16x128xf32>
    %cst_8 = arith.constant 2.000000e-01 : f32
    %10 = vector.broadcast %cst_8 : f32 to vector<16x128xf32>
    %11 = arith.mulf %10, %7 : vector<16x128xf32>
    %12 = arith.select %9, %7, %11 : vector<16x128xi1>, vector<16x128xf32>
    %13 = arith.truncf %12 : vector<16x128xf32> to vector<16x128xbf16>
    %c0_9 = arith.constant 0 : index
    %c0_10 = arith.constant 0 : index
    %c0_11 = arith.constant 0 : index
    %14 = vector.load %arg4[%c0_9, %c0_10, %c0_11] : memref<2x128x256xbf16, #tpu.memory_space<vmem>>, vector<1x128x256xbf16>
    %15 = vector.shape_cast %14 : vector<1x128x256xbf16> to vector<128x256xbf16>
    %cst_12 = arith.constant dense<0.000000e+00> : vector<16x256xf32>
    %16 = tpu.matmul %13, %15, %cst_12 {dimension_numbers = #tpu.dot_dimension_numbers<[1], [0], [0], [1], [0, 0, 1, 1], [], []>} : vector<16x128xbf16>, vector<128x256xbf16>, vector<16x256xf32> -> vector<16x256xf32>
    %c0_13 = arith.constant 0 : index
    %c0_14 = arith.constant 0 : index
    %c0_15 = arith.constant 0 : index
    %17 = vector.load %arg5[%c0_13, %c0_14, %c0_15] : memref<2x1x256xf32, #tpu.memory_space<vmem>>, vector<1x1x256xf32>
    %18 = vector.shape_cast %17 : vector<1x1x256xf32> to vector<1x256xf32>
    %19 = vector.broadcast %18 : vector<1x256xf32> to vector<16x256xf32>
    %20 = arith.addf %16, %19 : vector<16x256xf32>
    %cst_16 = arith.constant 0.000000e+00 : f32
    %21 = vector.broadcast %cst_16 : f32 to vector<16x256xf32>
    %22 = arith.cmpf oge, %20, %21 : vector<16x256xf32>
    %cst_17 = arith.constant 2.000000e-01 : f32
    %23 = vector.broadcast %cst_17 : f32 to vector<16x256xf32>
    %24 = arith.mulf %23, %20 : vector<16x256xf32>
    %25 = arith.select %22, %20, %24 : vector<16x256xi1>, vector<16x256xf32>
    %26 = arith.truncf %25 : vector<16x256xf32> to vector<16x256xbf16>
    %c0_18 = arith.constant 0 : index
    %c0_19 = arith.constant 0 : index
    %c0_20 = arith.constant 0 : index
    %27 = vector.load %arg6[%c0_18, %c0_19, %c0_20] : memref<2x256x256xbf16, #tpu.memory_space<vmem>>, vector<1x256x256xbf16>
    %28 = vector.shape_cast %27 : vector<1x256x256xbf16> to vector<256x256xbf16>
    %cst_21 = arith.constant dense<0.000000e+00> : vector<16x256xf32>
    %29 = tpu.matmul %26, %28, %cst_21 {dimension_numbers = #tpu.dot_dimension_numbers<[1], [0], [0], [1], [0, 0, 1, 1], [], []>} : vector<16x256xbf16>, vector<256x256xbf16>, vector<16x256xf32> -> vector<16x256xf32>
    %c0_22 = arith.constant 0 : index
    %c0_23 = arith.constant 0 : index
    %c0_24 = arith.constant 0 : index
    %30 = vector.load %arg7[%c0_22, %c0_23, %c0_24] : memref<2x1x256xf32, #tpu.memory_space<vmem>>, vector<1x1x256xf32>
    %31 = vector.shape_cast %30 : vector<1x1x256xf32> to vector<1x256xf32>
    %32 = vector.broadcast %31 : vector<1x256xf32> to vector<16x256xf32>
    %33 = arith.addf %29, %32 : vector<16x256xf32>
    %cst_25 = arith.constant 0.000000e+00 : f32
    %34 = vector.broadcast %cst_25 : f32 to vector<16x256xf32>
    %35 = arith.cmpf oge, %33, %34 : vector<16x256xf32>
    %cst_26 = arith.constant 2.000000e-01 : f32
    %36 = vector.broadcast %cst_26 : f32 to vector<16x256xf32>
    %37 = arith.mulf %36, %33 : vector<16x256xf32>
    %38 = arith.select %35, %33, %37 : vector<16x256xi1>, vector<16x256xf32>
    %39 = arith.truncf %38 : vector<16x256xf32> to vector<16x256xbf16>
    %c0_27 = arith.constant 0 : index
    %c0_28 = arith.constant 0 : index
    %c0_29 = arith.constant 0 : index
    %40 = vector.load %arg8[%c0_27, %c0_28, %c0_29] : memref<2x256x256xbf16, #tpu.memory_space<vmem>>, vector<1x256x256xbf16>
    %41 = vector.shape_cast %40 : vector<1x256x256xbf16> to vector<256x256xbf16>
    %cst_30 = arith.constant dense<0.000000e+00> : vector<16x256xf32>
    %42 = tpu.matmul %39, %41, %cst_30 {dimension_numbers = #tpu.dot_dimension_numbers<[1], [0], [0], [1], [0, 0, 1, 1], [], []>} : vector<16x256xbf16>, vector<256x256xbf16>, vector<16x256xf32> -> vector<16x256xf32>
    %c0_31 = arith.constant 0 : index
    %c0_32 = arith.constant 0 : index
    %c0_33 = arith.constant 0 : index
    %43 = vector.load %arg9[%c0_31, %c0_32, %c0_33] : memref<2x1x256xf32, #tpu.memory_space<vmem>>, vector<1x1x256xf32>
    %44 = vector.shape_cast %43 : vector<1x1x256xf32> to vector<1x256xf32>
    %45 = vector.broadcast %44 : vector<1x256xf32> to vector<16x256xf32>
    %46 = arith.addf %42, %45 : vector<16x256xf32>
    %cst_34 = arith.constant 0.000000e+00 : f32
    %47 = vector.broadcast %cst_34 : f32 to vector<16x256xf32>
    %48 = arith.cmpf oge, %46, %47 : vector<16x256xf32>
    %cst_35 = arith.constant 2.000000e-01 : f32
    %49 = vector.broadcast %cst_35 : f32 to vector<16x256xf32>
    %50 = arith.mulf %49, %46 : vector<16x256xf32>
    %51 = arith.select %48, %46, %50 : vector<16x256xi1>, vector<16x256xf32>
    %52 = arith.truncf %51 : vector<16x256xf32> to vector<16x256xbf16>
    %c0_36 = arith.constant 0 : index
    %c0_37 = arith.constant 0 : index
    %c0_38 = arith.constant 0 : index
    %53 = vector.load %arg10[%c0_36, %c0_37, %c0_38] : memref<2x256x128xbf16, #tpu.memory_space<vmem>>, vector<1x256x128xbf16>
    %54 = vector.shape_cast %53 : vector<1x256x128xbf16> to vector<256x128xbf16>
    %cst_39 = arith.constant dense<0.000000e+00> : vector<16x128xf32>
    %55 = tpu.matmul %52, %54, %cst_39 {dimension_numbers = #tpu.dot_dimension_numbers<[1], [0], [0], [1], [0, 0, 1, 1], [], []>} : vector<16x256xbf16>, vector<256x128xbf16>, vector<16x128xf32> -> vector<16x128xf32>
    %c0_40 = arith.constant 0 : index
    %c0_41 = arith.constant 0 : index
    %c0_42 = arith.constant 0 : index
    %56 = vector.load %arg11[%c0_40, %c0_41, %c0_42] : memref<2x1x128xf32, #tpu.memory_space<vmem>>, vector<1x1x128xf32>
    %57 = vector.shape_cast %56 : vector<1x1x128xf32> to vector<1x128xf32>
    %58 = vector.broadcast %57 : vector<1x128xf32> to vector<16x128xf32>
    %59 = arith.addf %55, %58 : vector<16x128xf32>
    %60 = math.tanh %59 : vector<16x128xf32>
    %c0_43 = arith.constant 0 : index
    %c0_44 = arith.constant 0 : index
    %61 = vector.load %arg12[%c0_43, %c0_44] : memref<16x128xf32, #tpu.memory_space<vmem>>, vector<16x128xf32>
    tpu.vector_store %arg12[%c0_43, %c0_44], %60 {strides = array<i32>} : memref<16x128xf32, #tpu.memory_space<vmem>>, vector<16x128xf32>,
    %c1 = arith.constant 1 : index
    %c0_45 = arith.constant 0 : index
    %c0_46 = arith.constant 0 : index
    %62 = vector.load %arg2[%c1, %c0_45, %c0_46] : memref<2x128x128xbf16, #tpu.memory_space<vmem>>, vector<1x128x128xbf16>
    %63 = vector.shape_cast %62 : vector<1x128x128xbf16> to vector<128x128xbf16>
    %cst_47 = arith.constant dense<0.000000e+00> : vector<16x128xf32>
    %64 = tpu.matmul %0, %63, %cst_47 {dimension_numbers = #tpu.dot_dimension_numbers<[1], [0], [0], [1], [0, 0, 1, 1], [], []>} : vector<16x128xbf16>, vector<128x128xbf16>, vector<16x128xf32> -> vector<16x128xf32>
    %c1_48 = arith.constant 1 : index
    %c0_49 = arith.constant 0 : index
    %c0_50 = arith.constant 0 : index
    %65 = vector.load %arg3[%c1_48, %c0_49, %c0_50] : memref<2x1x128xf32, #tpu.memory_space<vmem>>, vector<1x1x128xf32>
    %66 = vector.shape_cast %65 : vector<1x1x128xf32> to vector<1x128xf32>
    %67 = vector.broadcast %66 : vector<1x128xf32> to vector<16x128xf32>
    %68 = arith.addf %64, %67 : vector<16x128xf32>
    %cst_51 = arith.constant 0.000000e+00 : f32
    %69 = vector.broadcast %cst_51 : f32 to vector<16x128xf32>
    %70 = arith.cmpf oge, %68, %69 : vector<16x128xf32>
    %cst_52 = arith.constant 2.000000e-01 : f32
    %71 = vector.broadcast %cst_52 : f32 to vector<16x128xf32>
    %72 = arith.mulf %71, %68 : vector<16x128xf32>
    %73 = arith.select %70, %68, %72 : vector<16x128xi1>, vector<16x128xf32>
    %74 = arith.truncf %73 : vector<16x128xf32> to vector<16x128xbf16>
    %c1_53 = arith.constant 1 : index
    %c0_54 = arith.constant 0 : index
    %c0_55 = arith.constant 0 : index
    %75 = vector.load %arg4[%c1_53, %c0_54, %c0_55] : memref<2x128x256xbf16, #tpu.memory_space<vmem>>, vector<1x128x256xbf16>
    %76 = vector.shape_cast %75 : vector<1x128x256xbf16> to vector<128x256xbf16>
    %cst_56 = arith.constant dense<0.000000e+00> : vector<16x256xf32>
    %77 = tpu.matmul %74, %76, %cst_56 {dimension_numbers = #tpu.dot_dimension_numbers<[1], [0], [0], [1], [0, 0, 1, 1], [], []>} : vector<16x128xbf16>, vector<128x256xbf16>, vector<16x256xf32> -> vector<16x256xf32>
    %c1_57 = arith.constant 1 : index
    %c0_58 = arith.constant 0 : index
    %c0_59 = arith.constant 0 : index
    %78 = vector.load %arg5[%c1_57, %c0_58, %c0_59] : memref<2x1x256xf32, #tpu.memory_space<vmem>>, vector<1x1x256xf32>
    %79 = vector.shape_cast %78 : vector<1x1x256xf32> to vector<1x256xf32>
    %80 = vector.broadcast %79 : vector<1x256xf32> to vector<16x256xf32>
    %81 = arith.addf %77, %80 : vector<16x256xf32>
    %cst_60 = arith.constant 0.000000e+00 : f32
    %82 = vector.broadcast %cst_60 : f32 to vector<16x256xf32>
    %83 = arith.cmpf oge, %81, %82 : vector<16x256xf32>
    %cst_61 = arith.constant 2.000000e-01 : f32
    %84 = vector.broadcast %cst_61 : f32 to vector<16x256xf32>
    %85 = arith.mulf %84, %81 : vector<16x256xf32>
    %86 = arith.select %83, %81, %85 : vector<16x256xi1>, vector<16x256xf32>
    %87 = arith.truncf %86 : vector<16x256xf32> to vector<16x256xbf16>
    %c1_62 = arith.constant 1 : index
    %c0_63 = arith.constant 0 : index
    %c0_64 = arith.constant 0 : index
    %88 = vector.load %arg6[%c1_62, %c0_63, %c0_64] : memref<2x256x256xbf16, #tpu.memory_space<vmem>>, vector<1x256x256xbf16>
    %89 = vector.shape_cast %88 : vector<1x256x256xbf16> to vector<256x256xbf16>
    %cst_65 = arith.constant dense<0.000000e+00> : vector<16x256xf32>
    %90 = tpu.matmul %87, %89, %cst_65 {dimension_numbers = #tpu.dot_dimension_numbers<[1], [0], [0], [1], [0, 0, 1, 1], [], []>} : vector<16x256xbf16>, vector<256x256xbf16>, vector<16x256xf32> -> vector<16x256xf32>
    %c1_66 = arith.constant 1 : index
    %c0_67 = arith.constant 0 : index
    %c0_68 = arith.constant 0 : index
    %91 = vector.load %arg7[%c1_66, %c0_67, %c0_68] : memref<2x1x256xf32, #tpu.memory_space<vmem>>, vector<1x1x256xf32>
    %92 = vector.shape_cast %91 : vector<1x1x256xf32> to vector<1x256xf32>
    %93 = vector.broadcast %92 : vector<1x256xf32> to vector<16x256xf32>
    %94 = arith.addf %90, %93 : vector<16x256xf32>
    %cst_69 = arith.constant 0.000000e+00 : f32
    %95 = vector.broadcast %cst_69 : f32 to vector<16x256xf32>
    %96 = arith.cmpf oge, %94, %95 : vector<16x256xf32>
    %cst_70 = arith.constant 2.000000e-01 : f32
    %97 = vector.broadcast %cst_70 : f32 to vector<16x256xf32>
    %98 = arith.mulf %97, %94 : vector<16x256xf32>
    %99 = arith.select %96, %94, %98 : vector<16x256xi1>, vector<16x256xf32>
    %100 = arith.truncf %99 : vector<16x256xf32> to vector<16x256xbf16>
    %c1_71 = arith.constant 1 : index
    %c0_72 = arith.constant 0 : index
    %c0_73 = arith.constant 0 : index
    %101 = vector.load %arg8[%c1_71, %c0_72, %c0_73] : memref<2x256x256xbf16, #tpu.memory_space<vmem>>, vector<1x256x256xbf16>
    %102 = vector.shape_cast %101 : vector<1x256x256xbf16> to vector<256x256xbf16>
    %cst_74 = arith.constant dense<0.000000e+00> : vector<16x256xf32>
    %103 = tpu.matmul %100, %102, %cst_74 {dimension_numbers = #tpu.dot_dimension_numbers<[1], [0], [0], [1], [0, 0, 1, 1], [], []>} : vector<16x256xbf16>, vector<256x256xbf16>, vector<16x256xf32> -> vector<16x256xf32>
    %c1_75 = arith.constant 1 : index
    %c0_76 = arith.constant 0 : index
    %c0_77 = arith.constant 0 : index
    %104 = vector.load %arg9[%c1_75, %c0_76, %c0_77] : memref<2x1x256xf32, #tpu.memory_space<vmem>>, vector<1x1x256xf32>
    %105 = vector.shape_cast %104 : vector<1x1x256xf32> to vector<1x256xf32>
    %106 = vector.broadcast %105 : vector<1x256xf32> to vector<16x256xf32>
    %107 = arith.addf %103, %106 : vector<16x256xf32>
    %cst_78 = arith.constant 0.000000e+00 : f32
    %108 = vector.broadcast %cst_78 : f32 to vector<16x256xf32>
    %109 = arith.cmpf oge, %107, %108 : vector<16x256xf32>
    %cst_79 = arith.constant 2.000000e-01 : f32
    %110 = vector.broadcast %cst_79 : f32 to vector<16x256xf32>
    %111 = arith.mulf %110, %107 : vector<16x256xf32>
    %112 = arith.select %109, %107, %111 : vector<16x256xi1>, vector<16x256xf32>
    %113 = arith.truncf %112 : vector<16x256xf32> to vector<16x256xbf16>
    %c1_80 = arith.constant 1 : index
    %c0_81 = arith.constant 0 : index
    %c0_82 = arith.constant 0 : index
    %114 = vector.load %arg10[%c1_80, %c0_81, %c0_82] : memref<2x256x128xbf16, #tpu.memory_space<vmem>>, vector<1x256x128xbf16>
    %115 = vector.shape_cast %114 : vector<1x256x128xbf16> to vector<256x128xbf16>
    %cst_83 = arith.constant dense<0.000000e+00> : vector<16x128xf32>
    %116 = tpu.matmul %113, %115, %cst_83 {dimension_numbers = #tpu.dot_dimension_numbers<[1], [0], [0], [1], [0, 0, 1, 1], [], []>} : vector<16x256xbf16>, vector<256x128xbf16>, vector<16x128xf32> -> vector<16x128xf32>
    %c1_84 = arith.constant 1 : index
    %c0_85 = arith.constant 0 : index
    %c0_86 = arith.constant 0 : index
    %117 = vector.load %arg11[%c1_84, %c0_85, %c0_86] : memref<2x1x128xf32, #tpu.memory_space<vmem>>, vector<1x1x128xf32>
    %118 = vector.shape_cast %117 : vector<1x1x128xf32> to vector<1x128xf32>
    %119 = vector.broadcast %118 : vector<1x128xf32> to vector<16x128xf32>
    %120 = arith.addf %116, %119 : vector<16x128xf32>
    %121 = math.tanh %120 : vector<16x128xf32>
    %c0_87 = arith.constant 0 : index
    %c0_88 = arith.constant 0 : index
    %122 = vector.load %arg13[%c0_87, %c0_88] : memref<16x128xf32, #tpu.memory_space<vmem>>, vector<16x128xf32>
    tpu.vector_store %arg13[%c0_87, %c0_88], %121 {strides = array<i32>} : memref<16x128xf32, #tpu.memory_space<vmem>>, vector<16x128xf32>,
    return
  }
  func.func @transform_0(%arg0: i32) -> (i32, i32) {
    %c0_i32 = arith.constant 0 : i32
    %c0_i32_0 = arith.constant 0 : i32
    return %arg0, %c0_i32 : i32, i32
  }
  func.func @transform_1(%arg0: i32) -> (i32, i32, i32) {
    %c0_i32 = arith.constant 0 : i32
    %c0_i32_0 = arith.constant 0 : i32
    %c0_i32_1 = arith.constant 0 : i32
    %c0_i32_2 = arith.constant 0 : i32
    return %c0_i32, %c0_i32_0, %c0_i32_1 : i32, i32, i32
  }
  func.func @transform_2(%arg0: i32) -> (i32, i32, i32) {
    %c0_i32 = arith.constant 0 : i32
    %c0_i32_0 = arith.constant 0 : i32
    %c0_i32_1 = arith.constant 0 : i32
    %c0_i32_2 = arith.constant 0 : i32
    return %c0_i32, %c0_i32_0, %c0_i32_1 : i32, i32, i32
  }
  func.func @transform_3(%arg0: i32) -> (i32, i32, i32) {
    %c0_i32 = arith.constant 0 : i32
    %c0_i32_0 = arith.constant 0 : i32
    %c0_i32_1 = arith.constant 0 : i32
    %c0_i32_2 = arith.constant 0 : i32
    return %c0_i32, %c0_i32_0, %c0_i32_1 : i32, i32, i32
  }
  func.func @transform_4(%arg0: i32) -> (i32, i32, i32) {
    %c0_i32 = arith.constant 0 : i32
    %c0_i32_0 = arith.constant 0 : i32
    %c0_i32_1 = arith.constant 0 : i32
    %c0_i32_2 = arith.constant 0 : i32
    return %c0_i32, %c0_i32_0, %c0_i32_1 : i32, i32, i32
  }
  func.func @transform_5(%arg0: i32) -> (i32, i32, i32) {
    %c0_i32 = arith.constant 0 : i32
    %c0_i32_0 = arith.constant 0 : i32
    %c0_i32_1 = arith.constant 0 : i32
    %c0_i32_2 = arith.constant 0 : i32
    return %c0_i32, %c0_i32_0, %c0_i32_1 : i32, i32, i32
  }
  func.func @transform_6(%arg0: i32) -> (i32, i32, i32) {
    %c0_i32 = arith.constant 0 : i32
    %c0_i32_0 = arith.constant 0 : i32
    %c0_i32_1 = arith.constant 0 : i32
    %c0_i32_2 = arith.constant 0 : i32
    return %c0_i32, %c0_i32_0, %c0_i32_1 : i32, i32, i32
  }
  func.func @transform_7(%arg0: i32) -> (i32, i32, i32) {
    %c0_i32 = arith.constant 0 : i32
    %c0_i32_0 = arith.constant 0 : i32
    %c0_i32_1 = arith.constant 0 : i32
    %c0_i32_2 = arith.constant 0 : i32
    return %c0_i32, %c0_i32_0, %c0_i32_1 : i32, i32, i32
  }
  func.func @transform_8(%arg0: i32) -> (i32, i32, i32) {
    %c0_i32 = arith.constant 0 : i32
    %c0_i32_0 = arith.constant 0 : i32
    %c0_i32_1 = arith.constant 0 : i32
    %c0_i32_2 = arith.constant 0 : i32
    return %c0_i32, %c0_i32_0, %c0_i32_1 : i32, i32, i32
  }
  func.func @transform_9(%arg0: i32) -> (i32, i32, i32) {
    %c0_i32 = arith.constant 0 : i32
    %c0_i32_0 = arith.constant 0 : i32
    %c0_i32_1 = arith.constant 0 : i32
    %c0_i32_2 = arith.constant 0 : i32
    return %c0_i32, %c0_i32_0, %c0_i32_1 : i32, i32, i32
  }
  func.func @transform_10(%arg0: i32) -> (i32, i32, i32) {
    %c0_i32 = arith.constant 0 : i32
    %c0_i32_0 = arith.constant 0 : i32
    %c0_i32_1 = arith.constant 0 : i32
    %c0_i32_2 = arith.constant 0 : i32
    return %c0_i32, %c0_i32_0, %c0_i32_1 : i32, i32, i32
  }
  func.func @transform_11(%arg0: i32) -> (i32, i32) {
    %c0_i32 = arith.constant 0 : i32
    %c0_i32_0 = arith.constant 0 : i32
    return %arg0, %c0_i32 : i32, i32
  }
  func.func @transform_12(%arg0: i32) -> (i32, i32) {
    %c0_i32 = arith.constant 0 : i32
    %c0_i32_0 = arith.constant 0 : i32
    return %arg0, %c0_i32 : i32, i32
  }
}

</mosaic_0001>

<llo_original>
// kernel: _decx_forward_jit.1
$region0: #{_decx_forward_jit.1}
  #allocation0 [shape = 'u32[]', space=smem, size = 0x4, offset = 0x4, fixed_abs, tag = 'smem constant byte address 0x4 - core index']
  #allocation1 [shape = 'u32[72,128]{1,0:T(1,128)}', space=vmem, size = 0x9000, scoped, tag = 'internal scratch']
  %s0 = inlined_call_operand.vmem [shape: bf16[16,128], index: 0, kind: input, shape index: {}]
  %s1 = inlined_call_operand.hbm [shape: bf16[2,128,128], index: 1, kind: input, shape index: {}]
  %s2 = inlined_call_operand.vmem [shape: f32[2,1,128], index: 2, kind: input, shape index: {}]
  %s3 = inlined_call_operand.hbm [shape: bf16[2,128,256], index: 3, kind: input, shape index: {}]
  %s4 = inlined_call_operand.vmem [shape: f32[2,1,256], index: 4, kind: input, shape index: {}]
  %s5 = inlined_call_operand.hbm [shape: bf16[2,256,256], index: 5, kind: input, shape index: {}]
  %s6 = inlined_call_operand.vmem [shape: f32[2,1,256], index: 6, kind: input, shape index: {}]
  %s7 = inlined_call_operand.hbm [shape: bf16[2,256,256], index: 7, kind: input, shape index: {}]
  %s8 = inlined_call_operand.vmem [shape: f32[2,1,256], index: 8, kind: input, shape index: {}]
  %s9 = inlined_call_operand.hbm [shape: bf16[2,256,128], index: 9, kind: input, shape index: {}]
  %s10 = inlined_call_operand.vmem [shape: f32[2,1,128], index: 10, kind: input, shape index: {}]
  %s11 = inlined_call_operand.hbm [shape: f32[16,128], index: 11, kind: output, shape index: {0}]
  %s12 = inlined_call_operand.hbm [shape: f32[16,128], index: 12, kind: output, shape index: {1}]
  %13 = xla_tuple %s11, %s12
  %s14 = sld [smem:[#allocation0]]
  $region82: #{_decx_forward_jit.1} parent=0
    _
  %s16 = ssub.s32 1, %s14
  %s17 = scalar_select 0, %s16, %s14
  $region1: #{_decx_forward_jit.1} parent=0
    #allocation2 [shape = 'u8[65536]{0}', space=vmem, size = 0x10000, scoped, tag = 'input window, operand 1, single buffered']
    #allocation3 [shape = 's32[1]{0}', space=sflag, size = 0x4, scoped, tag = 'scoped memory for _decx_forward_jit.1']
    #allocation4 [shape = 's32[1]{0}', space=sflag, size = 0x4, scoped, tag = 'scoped memory for _decx_forward_jit.1']
    #allocation5 [shape = 'u8[131072]{0}', space=vmem, size = 0x20000, scoped, tag = 'input window, operand 3, single buffered']
    #allocation6 [shape = 's32[1]{0}', space=sflag, size = 0x4, scoped, tag = 'scoped memory for _decx_forward_jit.1']
    #allocation7 [shape = 'u8[262144]{0}', space=vmem, size = 0x40000, scoped, tag = 'input window, operand 5, single buffered']
    #allocation8 [shape = 'u8[262144]{0}', space=vmem, size = 0x40000, scoped, tag = 'input window, operand 7, single buffered']
    #allocation9 [shape = 's32[1]{0}', space=sflag, size = 0x4, scoped, tag = 'scoped memory for _decx_forward_jit.1']
    #allocation10 [shape = 'u8[131072]{0}', space=vmem, size = 0x20000, scoped, tag = 'input window, operand 9, single buffered']
    #allocation11 [shape = 'u8[8192]{0}', space=vmem, size = 0x2000, scoped, tag = 'output window, operand 0, single buffered']
    #allocation12 [shape = 'u8[8192]{0}', space=vmem, size = 0x2000, scoped, tag = 'output window, operand 1, single buffered']
    #allocation13 [shape = 's32[1]{0}', space=sflag, size = 0x4, scoped, tag = 'scoped memory for _decx_forward_jit.1']
    %18 = vsyncpa [#allocation3], 0
    %19 = vsyncpa [#allocation6], 0
    %20 = vsyncpa [#allocation9], 0
    %21 = vsyncpa [#allocation4], 0
    %22 = vsyncpa [#allocation13], 0
    // Predicated region
    $region2: #{_decx_forward_jit.1} parent=1 // pred_check
      _
    $region3: #{_decx_forward_jit.1} parent=1 // pred_check_branch
      %24 = sbr.rel (0) target = $region5
    $region4: #{_decx_forward_jit.1} parent=1 // pred_region
      _
    $region5: #{_decx_forward_jit.1} parent=1 // pred_fallthru
      _
    // Predicated region
    $region6: #{_decx_forward_jit.1} parent=1 // pred_check
      _
    $region7: #{_decx_forward_jit.1} parent=1 // pred_check_branch
      %26 = sbr.rel (0) target = $region9
    $region8: #{_decx_forward_jit.1} parent=1 // pred_region
      %28 = vsyncadd [#allocation3], 0
      %s29 = sshll.u32 %s1, 4
      %s30 = int_to_ptr.hbm [resolvable:$true] %s29
      %s31 = sshll.u32 [#allocation2], 4
      %s32 = int_to_ptr.vmem [resolvable:$true] %s31
      %37 = dma.hbm_to_vmem [thread:$0]  %s30, 2048, %s32, [#allocation3], 64, 64, 4
    $region9: #{_decx_forward_jit.1} parent=1 // pred_fallthru
      _
    // Predicated region
    $region10: #{_decx_forward_jit.1} parent=1 // pred_check
      _
    $region11: #{_decx_forward_jit.1} parent=1 // pred_check_branch
      %39 = sbr.rel (0) target = $region13
    $region12: #{_decx_forward_jit.1} parent=1 // pred_region
      _
    $region13: #{_decx_forward_jit.1} parent=1 // pred_fallthru
      _
    // Predicated region
    $region14: #{_decx_forward_jit.1} parent=1 // pred_check
      _
    $region15: #{_decx_forward_jit.1} parent=1 // pred_check_branch
      %41 = sbr.rel (0) target = $region17
    $region16: #{_decx_forward_jit.1} parent=1 // pred_region
      %43 = vsyncadd [#allocation6], 0
      %s44 = sshll.u32 %s3, 4
      %s45 = int_to_ptr.hbm [resolvable:$true] %s44
      %s46 = sshll.u32 [#allocation5], 4
      %s47 = int_to_ptr.vmem [resolvable:$true] %s46
      %52 = dma.hbm_to_vmem [thread:$0]  %s45, 4096, %s47, [#allocation6], 128, 128, 8
    $region17: #{_decx_forward_jit.1} parent=1 // pred_fallthru
      _
    // Predicated region
    $region18: #{_decx_forward_jit.1} parent=1 // pred_check
      _
    $region19: #{_decx_forward_jit.1} parent=1 // pred_check_branch
      %54 = sbr.rel (0) target = $region21
    $region20: #{_decx_forward_jit.1} parent=1 // pred_region
      _
    $region21: #{_decx_forward_jit.1} parent=1 // pred_fallthru
      _
    // Predicated region
    $region22: #{_decx_forward_jit.1} parent=1 // pred_check
      _
    $region23: #{_decx_forward_jit.1} parent=1 // pred_check_branch
      %56 = sbr.rel (0) target = $region25
    $region24: #{_decx_forward_jit.1} parent=1 // pred_region
      %58 = vsyncadd [#allocation6], 0
      %s59 = sshll.u32 %s5, 4
      %s60 = int_to_ptr.hbm [resolvable:$true] %s59
      %s61 = sshll.u32 [#allocation7], 4
      %s62 = int_to_ptr.vmem [resolvable:$true] %s61
      %67 = dma.hbm_to_vmem [thread:$0]  %s60, 8192, %s62, [#allocation6], 128, 128, 8
    $region25: #{_decx_forward_jit.1} parent=1 // pred_fallthru
      _
    // Predicated region
    $region26: #{_decx_forward_jit.1} parent=1 // pred_check
      _
    $region27: #{_decx_forward_jit.1} parent=1 // pred_check_branch
      %69 = sbr.rel (0) target = $region29
    $region28: #{_decx_forward_jit.1} parent=1 // pred_region
      _
    $region29: #{_decx_forward_jit.1} parent=1 // pred_fallthru
      _
    // Predicated region
    $region30: #{_decx_forward_jit.1} parent=1 // pred_check
      _
    $region31: #{_decx_forward_jit.1} parent=1 // pred_check_branch
      %71 = sbr.rel (0) target = $region33
    $region32: #{_decx_forward_jit.1} parent=1 // pred_region
      %73 = vsyncadd [#allocation9], 0
      %s74 = sshll.u32 %s7, 4
      %s75 = int_to_ptr.hbm [resolvable:$true] %s74
      %s76 = sshll.u32 [#allocation8], 4
      %s77 = int_to_ptr.vmem [resolvable:$true] %s76
      %82 = dma.hbm_to_vmem [thread:$0]  %s75, 8192, %s77, [#allocation9], 128, 128, 8
    $region33: #{_decx_forward_jit.1} parent=1 // pred_fallthru
      _
    // Predicated region
    $region34: #{_decx_forward_jit.1} parent=1 // pred_check
      _
    $region35: #{_decx_forward_jit.1} parent=1 // pred_check_branch
      %84 = sbr.rel (0) target = $region37
    $region36: #{_decx_forward_jit.1} parent=1 // pred_region
      _
    $region37: #{_decx_forward_jit.1} parent=1 // pred_fallthru
      _
    // Predicated region
    $region38: #{_decx_forward_jit.1} parent=1 // pred_check
      _
    $region39: #{_decx_forward_jit.1} parent=1 // pred_check_branch
      %86 = sbr.rel (0) target = $region41
    $region40: #{_decx_forward_jit.1} parent=1 // pred_region
      %88 = vsyncadd [#allocation9], 0
      %s89 = sshll.u32 %s9, 4
      %s90 = int_to_ptr.hbm [resolvable:$true] %s89
      %s91 = sshll.u32 [#allocation10], 4
      %s92 = int_to_ptr.vmem [resolvable:$true] %s91
      %97 = dma.hbm_to_vmem [thread:$0]  %s90, 4096, %s92, [#allocation9], 64, 64, 4
    $region41: #{_decx_forward_jit.1} parent=1 // pred_fallthru
      _
    // Predicated region
    $region42: #{_decx_forward_jit.1} parent=1 // pred_check
      _
    $region43: #{_decx_forward_jit.1} parent=1 // pred_check_branch
      %99 = sbr.rel (0) target = $region45
    $region44: #{_decx_forward_jit.1} parent=1 // pred_region
      _
    $region45: #{_decx_forward_jit.1} parent=1 // pred_fallthru
      _
    // Predicated region
    $region46: #{_decx_forward_jit.1} parent=1 // pred_check
      _
    $region47: #{_decx_forward_jit.1} parent=1 // pred_check_branch
      %101 = sbr.rel (0) target = $region49
    $region48: #{_decx_forward_jit.1} parent=1 // pred_region
      %103 = dma.done [#allocation3], 2048
    $region49: #{_decx_forward_jit.1} parent=1 // pred_fallthru
      _
    // Predicated region
    $region50: #{_decx_forward_jit.1} parent=1 // pred_check
      _
    $region51: #{_decx_forward_jit.1} parent=1 // pred_check_branch
      %105 = sbr.rel (0) target = $region53
    $region52: #{_decx_forward_jit.1} parent=1 // pred_region
      %107 = dma.done [#allocation6], 4096
    $region53: #{_decx_forward_jit.1} parent=1 // pred_fallthru
      _
    // Predicated region
    $region54: #{_decx_forward_jit.1} parent=1 // pred_check
      _
    $region55: #{_decx_forward_jit.1} parent=1 // pred_check_branch
      %109 = sbr.rel (0) target = $region57
    $region56: #{_decx_forward_jit.1} parent=1 // pred_region
      %111 = dma.done [#allocation6], 8192
    $region57: #{_decx_forward_jit.1} parent=1 // pred_fallthru
      _
    // Predicated region
    $region58: #{_decx_forward_jit.1} parent=1 // pred_check
      _
    $region59: #{_decx_forward_jit.1} parent=1 // pred_check_branch
      %113 = sbr.rel (0) target = $region61
    $region60: #{_decx_forward_jit.1} parent=1 // pred_region
      %115 = dma.done [#allocation9], 8192
    $region61: #{_decx_forward_jit.1} parent=1 // pred_fallthru
      _
    // Predicated region
    $region62: #{_decx_forward_jit.1} parent=1 // pred_check
      _
    $region63: #{_decx_forward_jit.1} parent=1 // pred_check_branch
      %117 = sbr.rel (0) target = $region65
    $region64: #{_decx_forward_jit.1} parent=1 // pred_region
      %119 = dma.done [#allocation9], 4096
    $region65: #{_decx_forward_jit.1} parent=1 // pred_fallthru
      _
    %v120 = vld [vmem:[%s0] sm:$0xf]
    %v121 = vld [vmem:[%s0 + $0x4] sm:$0xf]
    %v122 = vld [vmem:[#allocation2] sm:$0xf]
    %v123 = vld [vmem:[#allocation2 + $0x4] sm:$0xf]
    %v124 = vld [vmem:[#allocation2 + $0x8] sm:$0xf]
    %v125 = vld [vmem:[#allocation2 + $0xc] sm:$0xf]
    %v126 = vld [vmem:[#allocation2 + $0x10] sm:$0xf]
    %v127 = vld [vmem:[#allocation2 + $0x14] sm:$0xf]
    %v128 = vld [vmem:[#allocation2 + $0x18] sm:$0xf]
    %v129 = vld [vmem:[#allocation2 + $0x1c] sm:$0xf]
    %v130 = vld [vmem:[#allocation2 + $0x20] sm:$0xf]
    %v131 = vld [vmem:[#allocation2 + $0x24] sm:$0xf]
    %v132 = vld [vmem:[#allocation2 + $0x28] sm:$0xf]
    %v133 = vld [vmem:[#allocation2 + $0x2c] sm:$0xf]
    %v134 = vld [vmem:[#allocation2 + $0x30] sm:$0xf]
    %v135 = vld [vmem:[#allocation2 + $0x34] sm:$0xf]
    %v136 = vld [vmem:[#allocation2 + $0x38] sm:$0xf]
    %v137 = vld [vmem:[#allocation2 + $0x3c] sm:$0xf]
    %v138 = vld [vmem:[%s2] sm:$0x1]
    %v140 = vperm.slane %v138, 0
    %v144 = vunpack.c.l.b16 %v120
    %v145 = vunpack.c.l.b16 %v121
    %v146 = vpack.c.b16 %v145, %v144
    %v164 = vunpack.c.l.b16 %v122
    %v165 = vunpack.c.l.b16 %v123
    %v166 = vunpack.c.l.b16 %v124
    %v167 = vunpack.c.l.b16 %v125
    %v168 = vunpack.c.l.b16 %v126
    %v169 = vunpack.c.l.b16 %v127
    %v170 = vunpack.c.l.b16 %v128
    %v171 = vunpack.c.l.b16 %v129
    %v172 = vunpack.c.l.b16 %v130
    %v173 = vunpack.c.l.b16 %v131
    %v174 = vunpack.c.l.b16 %v132
    %v175 = vunpack.c.l.b16 %v133
    %v176 = vunpack.c.l.b16 %v134
    %v177 = vunpack.c.l.b16 %v135
    %v178 = vunpack.c.l.b16 %v136
    %v179 = vunpack.c.l.b16 %v137
    %v180 = vpack.c.b16 %v165, %v164
    %v181 = vpack.c.b16 %v167, %v166
    %v182 = vpack.c.b16 %v169, %v168
    %v183 = vpack.c.b16 %v171, %v170
    %v184 = vpack.c.b16 %v173, %v172
    %v185 = vpack.c.b16 %v175, %v174
    %v186 = vpack.c.b16 %v177, %v176
    %v187 = vpack.c.b16 %v179, %v178
    %196 = vmatpush.bf16.msra.mxu0 %v187
    %197 = vmatpush.bf16.msra.mxu0 %v186
    %198 = vmatpush.bf16.msra.mxu0 %v185
    %199 = vmatpush.bf16.msra.mxu0 %v184
    %200 = vmatpush.bf16.msra.mxu0 %v183
    %201 = vmatpush.bf16.msra.mxu0 %v182
    %202 = vmatpush.bf16.msra.mxu0 %v181
    %203 = vmatpush.bf16.msra.mxu0 %v180
    %204 = vmatmul.bf16.gmra.mxu0 %v146
    %v205 = vpop.f32.mrf.mxu0
    %v206 = vadd.f32 %v140, %v205
    %v207 = vpop.f32.mrf.mxu0
    %v208 = vadd.f32 %v140, %v207
    %209 = vdwg.mxu0
    %vm210 = vcmp.ge.f32.partialorder %v206, 0.0
    %vm211 = vcmp.ge.f32.partialorder %v208, 0.0
    %v212 = vmul.f32 %v206, 0.2
    %v213 = vmul.f32 %v208, 0.2
    %v214 = vsel %vm210, %v206, %v212
    %v215 = vsel %vm211, %v208, %v213
    %v216 = vpack.c.bf16 %v215, %v214
    %v217 = vld [vmem:[#allocation5] sm:$0xff]
    %v218 = vld [vmem:[#allocation5 + $0x8] sm:$0xff]
    %v219 = vld [vmem:[#allocation5 + $0x10] sm:$0xff]
    %v220 = vld [vmem:[#allocation5 + $0x18] sm:$0xff]
    %v221 = vld [vmem:[#allocation5 + $0x20] sm:$0xff]
    %v222 = vld [vmem:[#allocation5 + $0x28] sm:$0xff]
    %v223 = vld [vmem:[#allocation5 + $0x30] sm:$0xff]
    %v224 = vld [vmem:[#allocation5 + $0x38] sm:$0xff]
    %v225 = vld [vmem:[#allocation5 + $0x40] sm:$0xff]
    %v226 = vld [vmem:[#allocation5 + $0x48] sm:$0xff]
    %v227 = vld [vmem:[#allocation5 + $0x50] sm:$0xff]
    %v228 = vld [vmem:[#allocation5 + $0x58] sm:$0xff]
    %v229 = vld [vmem:[#allocation5 + $0x60] sm:$0xff]
    %v230 = vld [vmem:[#allocation5 + $0x68] sm:$0xff]
    %v231 = vld [vmem:[#allocation5 + $0x70] sm:$0xff]
    %v232 = vld [vmem:[#allocation5 + $0x78] sm:$0xff]
    %v233 = vld [vmem:[%s4] sm:$0x3]
    %v235 = vperm.slane %v233, 0
    %v236 = vperm.slane %v233, 1
    %v255 = vunpack.c.l.b16 %v217
    %v256 = vunpack.c.h.b16 %v217
    %v257 = vunpack.c.l.b16 %v218
    %v258 = vunpack.c.h.b16 %v218
    %v259 = vunpack.c.l.b16 %v219
    %v260 = vunpack.c.h.b16 %v219
    %v261 = vunpack.c.l.b16 %v220
    %v262 = vunpack.c.h.b16 %v220
    %v263 = vunpack.c.l.b16 %v221
    %v264 = vunpack.c.h.b16 %v221
    %v265 = vunpack.c.l.b16 %v222
    %v266 = vunpack.c.h.b16 %v222
    %v267 = vunpack.c.l.b16 %v223
    %v268 = vunpack.c.h.b16 %v223
    %v269 = vunpack.c.l.b16 %v224
    %v270 = vunpack.c.h.b16 %v224
    %v271 = vunpack.c.l.b16 %v225
    %v272 = vunpack.c.h.b16 %v225
    %v273 = vunpack.c.l.b16 %v226
    %v274 = vunpack.c.h.b16 %v226
    %v275 = vunpack.c.l.b16 %v227
    %v276 = vunpack.c.h.b16 %v227
    %v277 = vunpack.c.l.b16 %v228
    %v278 = vunpack.c.h.b16 %v228
    %v279 = vunpack.c.l.b16 %v229
    %v280 = vunpack.c.h.b16 %v229
    %v281 = vunpack.c.l.b16 %v230
    %v282 = vunpack.c.h.b16 %v230
    %v283 = vunpack.c.l.b16 %v231
    %v284 = vunpack.c.h.b16 %v231
    %v285 = vunpack.c.l.b16 %v232
    %v286 = vunpack.c.h.b16 %v232
    %v287 = vpack.c.b16 %v257, %v255
    %v288 = vpack.c.b16 %v258, %v256
    %v289 = vpack.c.b16 %v261, %v259
    %v290 = vpack.c.b16 %v262, %v260
    %v291 = vpack.c.b16 %v265, %v263
    %v292 = vpack.c.b16 %v266, %v264
    %v293 = vpack.c.b16 %v269, %v267
    %v294 = vpack.c.b16 %v270, %v268
    %v295 = vpack.c.b16 %v273, %v271
    %v296 = vpack.c.b16 %v274, %v272
    %v297 = vpack.c.b16 %v277, %v275
    %v298 = vpack.c.b16 %v278, %v276
    %v299 = vpack.c.b16 %v281, %v279
    %v300 = vpack.c.b16 %v282, %v280
    %v301 = vpack.c.b16 %v285, %v283
    %v302 = vpack.c.b16 %v286, %v284
    %319 = vmatpush.bf16.msra.mxu0 %v301
    %320 = vmatpush.bf16.msra.mxu0 %v299
    %321 = vmatpush.bf16.msra.mxu0 %v297
    %322 = vmatpush.bf16.msra.mxu0 %v295
    %323 = vmatpush.bf16.msra.mxu0 %v293
    %324 = vmatpush.bf16.msra.mxu0 %v291
    %325 = vmatpush.bf16.msra.mxu0 %v289
    %326 = vmatpush.bf16.msra.mxu0 %v287
    %327 = vmatmul.bf16.gmra.mxu0 %v216
    %v328 = vpop.f32.mrf.mxu0
    %v329 = vadd.f32 %v235, %v328
    %v330 = vpop.f32.mrf.mxu0
    %v331 = vadd.f32 %v235, %v330
    %332 = vdwg.mxu0
    %333 = vmatpush.bf16.msra.mxu0 %v302
    %334 = vmatpush.bf16.msra.mxu0 %v300
    %335 = vmatpush.bf16.msra.mxu0 %v298
    %336 = vmatpush.bf16.msra.mxu0 %v296
    %337 = vmatpush.bf16.msra.mxu0 %v294
    %338 = vmatpush.bf16.msra.mxu0 %v292
    %339 = vmatpush.bf16.msra.mxu0 %v290
    %340 = vmatpush.bf16.msra.mxu0 %v288
    %341 = vmatmul.bf16.gmra.mxu0 %v216
    %v342 = vpop.f32.mrf.mxu0
    %v343 = vadd.f32 %v236, %v342
    %v344 = vpop.f32.mrf.mxu0
    %v345 = vadd.f32 %v236, %v344
    %346 = vdwg.mxu0
    %vm347 = vcmp.ge.f32.partialorder %v329, 0.0
    %vm348 = vcmp.ge.f32.partialorder %v343, 0.0
    %vm349 = vcmp.ge.f32.partialorder %v331, 0.0
    %vm350 = vcmp.ge.f32.partialorder %v345, 0.0
    %v351 = vmul.f32 %v329, 0.2
    %v352 = vmul.f32 %v343, 0.2
    %v353 = vmul.f32 %v331, 0.2
    %v354 = vmul.f32 %v345, 0.2
    %v355 = vsel %vm347, %v329, %v351
    %v356 = vsel %vm348, %v343, %v352
    %v357 = vsel %vm349, %v331, %v353
    %v358 = vsel %vm350, %v345, %v354
    %v359 = vpack.c.bf16 %v357, %v355
    %v360 = vpack.c.bf16 %v358, %v356
    %v361 = vld [vmem:[#allocation7] sm:$0xff]
    %v362 = vld [vmem:[#allocation7 + $0x8] sm:$0xff]
    %v363 = vld [vmem:[#allocation7 + $0x10] sm:$0xff]
    %v364 = vld [vmem:[#allocation7 + $0x18] sm:$0xff]
    %v365 = vld [vmem:[#allocation7 + $0x20] sm:$0xff]
    %v366 = vld [vmem:[#allocation7 + $0x28] sm:$0xff]
    %v367 = vld [vmem:[#allocation7 + $0x30] sm:$0xff]
    %v368 = vld [vmem:[#allocation7 + $0x38] sm:$0xff]
    %v369 = vld [vmem:[#allocation7 + $0x40] sm:$0xff]
    %v370 = vld [vmem:[#allocation7 + $0x48] sm:$0xff]
    %v371 = vld [vmem:[#allocation7 + $0x50] sm:$0xff]
    %v372 = vld [vmem:[#allocation7 + $0x58] sm:$0xff]
    %v373 = vld [vmem:[#allocation7 + $0x60] sm:$0xff]
    %v374 = vld [vmem:[#allocation7 + $0x68] sm:$0xff]
    %v375 = vld [vmem:[#allocation7 + $0x70] sm:$0xff]
    %v376 = vld [vmem:[#allocation7 + $0x78] sm:$0xff]
    %v377 = vld [vmem:[#allocation7 + $0x80] sm:$0xff]
    %v378 = vld [vmem:[#allocation7 + $0x88] sm:$0xff]
    %v379 = vld [vmem:[#allocation7 + $0x90] sm:$0xff]
    %v380 = vld [vmem:[#allocation7 + $0x98] sm:$0xff]
    %v381 = vld [vmem:[#allocation7 + $0xa0] sm:$0xff]
    %v382 = vld [vmem:[#allocation7 + $0xa8] sm:$0xff]
    %v383 = vld [vmem:[#allocation7 + $0xb0] sm:$0xff]
    %v384 = vld [vmem:[#allocation7 + $0xb8] sm:$0xff]
    %v385 = vld [vmem:[#allocation7 + $0xc0] sm:$0xff]
    %v386 = vld [vmem:[#allocation7 + $0xc8] sm:$0xff]
    %v387 = vld [vmem:[#allocation7 + $0xd0] sm:$0xff]
    %v388 = vld [vmem:[#allocation7 + $0xd8] sm:$0xff]
    %v389 = vld [vmem:[#allocation7 + $0xe0] sm:$0xff]
    %v390 = vld [vmem:[#allocation7 + $0xe8] sm:$0xff]
    %v391 = vld [vmem:[#allocation7 + $0xf0] sm:$0xff]
    %v392 = vld [vmem:[#allocation7 + $0xf8] sm:$0xff]
    %v393 = vld [vmem:[%s6] sm:$0x3]
    %v395 = vperm.slane %v393, 0
    %v396 = vperm.slane %v393, 1
    %v431 = vunpack.c.l.b16 %v361
    %v432 = vunpack.c.h.b16 %v361
    %v433 = vunpack.c.l.b16 %v362
    %v434 = vunpack.c.h.b16 %v362
    %v435 = vunpack.c.l.b16 %v363
    %v436 = vunpack.c.h.b16 %v363
    %v437 = vunpack.c.l.b16 %v364
    %v438 = vunpack.c.h.b16 %v364
    %v439 = vunpack.c.l.b16 %v365
    %v440 = vunpack.c.h.b16 %v365
    %v441 = vunpack.c.l.b16 %v366
    %v442 = vunpack.c.h.b16 %v366
    %v443 = vunpack.c.l.b16 %v367
    %v444 = vunpack.c.h.b16 %v367
    %v445 = vunpack.c.l.b16 %v368
    %v446 = vunpack.c.h.b16 %v368
    %v447 = vunpack.c.l.b16 %v369
    %v448 = vunpack.c.h.b16 %v369
    %v449 = vunpack.c.l.b16 %v370
    %v450 = vunpack.c.h.b16 %v370
    %v451 = vunpack.c.l.b16 %v371
    %v452 = vunpack.c.h.b16 %v371
    %v453 = vunpack.c.l.b16 %v372
    %v454 = vunpack.c.h.b16 %v372
    %v455 = vunpack.c.l.b16 %v373
    %v456 = vunpack.c.h.b16 %v373
    %v457 = vunpack.c.l.b16 %v374
    %v458 = vunpack.c.h.b16 %v374
    %v459 = vunpack.c.l.b16 %v375
    %v460 = vunpack.c.h.b16 %v375
    %v461 = vunpack.c.l.b16 %v376
    %v462 = vunpack.c.h.b16 %v376
    %v463 = vunpack.c.l.b16 %v377
    %v464 = vunpack.c.h.b16 %v377
    %v465 = vunpack.c.l.b16 %v378
    %v466 = vunpack.c.h.b16 %v378
    %v467 = vunpack.c.l.b16 %v379
    %v468 = vunpack.c.h.b16 %v379
    %v469 = vunpack.c.l.b16 %v380
    %v470 = vunpack.c.h.b16 %v380
    %v471 = vunpack.c.l.b16 %v381
    %v472 = vunpack.c.h.b16 %v381
    %v473 = vunpack.c.l.b16 %v382
    %v474 = vunpack.c.h.b16 %v382
    %v475 = vunpack.c.l.b16 %v383
    %v476 = vunpack.c.h.b16 %v383
    %v477 = vunpack.c.l.b16 %v384
    %v478 = vunpack.c.h.b16 %v384
    %v479 = vunpack.c.l.b16 %v385
    %v480 = vunpack.c.h.b16 %v385
    %v481 = vunpack.c.l.b16 %v386
    %v482 = vunpack.c.h.b16 %v386
    %v483 = vunpack.c.l.b16 %v387
    %v484 = vunpack.c.h.b16 %v387
    %v485 = vunpack.c.l.b16 %v388
    %v486 = vunpack.c.h.b16 %v388
    %v487 = vunpack.c.l.b16 %v389
    %v488 = vunpack.c.h.b16 %v389
    %v489 = vunpack.c.l.b16 %v390
    %v490 = vunpack.c.h.b16 %v390
    %v491 = vunpack.c.l.b16 %v391
    %v492 = vunpack.c.h.b16 %v391
    %v493 = vunpack.c.l.b16 %v392
    %v494 = vunpack.c.h.b16 %v392
    %v495 = vpack.c.b16 %v433, %v431
    %v496 = vpack.c.b16 %v434, %v432
    %v497 = vpack.c.b16 %v437, %v435
    %v498 = vpack.c.b16 %v438, %v436
    %v499 = vpack.c.b16 %v441, %v439
    %v500 = vpack.c.b16 %v442, %v440
    %v501 = vpack.c.b16 %v445, %v443
    %v502 = vpack.c.b16 %v446, %v444
    %v503 = vpack.c.b16 %v449, %v447
    %v504 = vpack.c.b16 %v450, %v448
    %v505 = vpack.c.b16 %v453, %v451
    %v506 = vpack.c.b16 %v454, %v452
    %v507 = vpack.c.b16 %v457, %v455
    %v508 = vpack.c.b16 %v458, %v456
    %v509 = vpack.c.b16 %v461, %v459
    %v510 = vpack.c.b16 %v462, %v460
    %v511 = vpack.c.b16 %v465, %v463
    %v512 = vpack.c.b16 %v466, %v464
    %v513 = vpack.c.b16 %v469, %v467
    %v514 = vpack.c.b16 %v470, %v468
    %v515 = vpack.c.b16 %v473, %v471
    %v516 = vpack.c.b16 %v474, %v472
    %v517 = vpack.c.b16 %v477, %v475
    %v518 = vpack.c.b16 %v478, %v476
    %v519 = vpack.c.b16 %v481, %v479
    %v520 = vpack.c.b16 %v482, %v480
    %v521 = vpack.c.b16 %v485, %v483
    %v522 = vpack.c.b16 %v486, %v484
    %v523 = vpack.c.b16 %v489, %v487
    %v524 = vpack.c.b16 %v490, %v488
    %v525 = vpack.c.b16 %v493, %v491
    %v526 = vpack.c.b16 %v494, %v492
    %559 = vmatpush.bf16.msra.mxu0 %v509
    %560 = vmatpush.bf16.msra.mxu0 %v507
    %561 = vmatpush.bf16.msra.mxu0 %v505
    %562 = vmatpush.bf16.msra.mxu0 %v503
    %563 = vmatpush.bf16.msra.mxu0 %v501
    %564 = vmatpush.bf16.msra.mxu0 %v499
    %565 = vmatpush.bf16.msra.mxu0 %v497
    %566 = vmatpush.bf16.msra.mxu0 %v495
    %567 = vmatmul.bf16.gmra.mxu0 %v359
    %v568 = vpop.f32.mrf.mxu0
    %v569 = vadd.f32 %v395, %v568
    %v570 = vpop.f32.mrf.mxu0
    %v571 = vadd.f32 %v395, %v570
    %572 = vdwg.mxu0
    %573 = vmatpush.bf16.msra.mxu0 %v525
    %574 = vmatpush.bf16.msra.mxu0 %v523
    %575 = vmatpush.bf16.msra.mxu0 %v521
    %576 = vmatpush.bf16.msra.mxu0 %v519
    %577 = vmatpush.bf16.msra.mxu0 %v517
    %578 = vmatpush.bf16.msra.mxu0 %v515
    %579 = vmatpush.bf16.msra.mxu0 %v513
    %580 = vmatpush.bf16.msra.mxu0 %v511
    %581 = vmatmul.bf16.gmra.mxu0 %v360
    %v582 = vpop.f32.mrf.mxu0
    %v583 = vadd.f32 %v569, %v582
    %v584 = vpop.f32.mrf.mxu0
    %v585 = vadd.f32 %v571, %v584
    %586 = vdwg.mxu0
    %587 = vmatpush.bf16.msra.mxu0 %v510
    %588 = vmatpush.bf16.msra.mxu0 %v508
    %589 = vmatpush.bf16.msra.mxu0 %v506
    %590 = vmatpush.bf16.msra.mxu0 %v504
    %591 = vmatpush.bf16.msra.mxu0 %v502
    %592 = vmatpush.bf16.msra.mxu0 %v500
    %593 = vmatpush.bf16.msra.mxu0 %v498
    %594 = vmatpush.bf16.msra.mxu0 %v496
    %595 = vmatmul.bf16.gmra.mxu0 %v359
    %v596 = vpop.f32.mrf.mxu0
    %v597 = vadd.f32 %v396, %v596
    %v598 = vpop.f32.mrf.mxu0
    %v599 = vadd.f32 %v396, %v598
    %600 = vdwg.mxu0
    %601 = vmatpush.bf16.msra.mxu0 %v526
    %602 = vmatpush.bf16.msra.mxu0 %v524
    %603 = vmatpush.bf16.msra.mxu0 %v522
    %604 = vmatpush.bf16.msra.mxu0 %v520
    %605 = vmatpush.bf16.msra.mxu0 %v518
    %606 = vmatpush.bf16.msra.mxu0 %v516
    %607 = vmatpush.bf16.msra.mxu0 %v514
    %608 = vmatpush.bf16.msra.mxu0 %v512
    %609 = vmatmul.bf16.gmra.mxu0 %v360
    %v610 = vpop.f32.mrf.mxu0
    %v611 = vadd.f32 %v597, %v610
    %v612 = vpop.f32.mrf.mxu0
    %v613 = vadd.f32 %v599, %v612
    %614 = vdwg.mxu0
    %vm615 = vcmp.ge.f32.partialorder %v583, 0.0
    %vm616 = vcmp.ge.f32.partialorder %v611, 0.0
    %vm617 = vcmp.ge.f32.partialorder %v585, 0.0
    %vm618 = vcmp.ge.f32.partialorder %v613, 0.0
    %v619 = vmul.f32 %v583, 0.2
    %v620 = vmul.f32 %v611, 0.2
    %v621 = vmul.f32 %v585, 0.2
    %v622 = vmul.f32 %v613, 0.2
    %v623 = vsel %vm615, %v583, %v619
    %v624 = vsel %vm616, %v611, %v620
    %v625 = vsel %vm617, %v585, %v621
    %v626 = vsel %vm618, %v613, %v622
    %v627 = vpack.c.bf16 %v625, %v623
    %v628 = vpack.c.bf16 %v626, %v624
    %v629 = vld [vmem:[#allocation8] sm:$0xff]
    %v630 = vld [vmem:[#allocation8 + $0x8] sm:$0xff]
    %v631 = vld [vmem:[#allocation8 + $0x10] sm:$0xff]
    %v632 = vld [vmem:[#allocation8 + $0x18] sm:$0xff]
    %v633 = vld [vmem:[#allocation8 + $0x20] sm:$0xff]
    %v634 = vld [vmem:[#allocation8 + $0x28] sm:$0xff]
    %v635 = vld [vmem:[#allocation8 + $0x30] sm:$0xff]
    %v636 = vld [vmem:[#allocation8 + $0x38] sm:$0xff]
    %v637 = vld [vmem:[#allocation8 + $0x40] sm:$0xff]
    %v638 = vld [vmem:[#allocation8 + $0x48] sm:$0xff]
    %v639 = vld [vmem:[#allocation8 + $0x50] sm:$0xff]
    %v640 = vld [vmem:[#allocation8 + $0x58] sm:$0xff]
    %v641 = vld [vmem:[#allocation8 + $0x60] sm:$0xff]
    %v642 = vld [vmem:[#allocation8 + $0x68] sm:$0xff]
    %v643 = vld [vmem:[#allocation8 + $0x70] sm:$0xff]
    %v644 = vld [vmem:[#allocation8 + $0x78] sm:$0xff]
    %v645 = vld [vmem:[#allocation8 + $0x80] sm:$0xff]
    %v646 = vld [vmem:[#allocation8 + $0x88] sm:$0xff]
    %v647 = vld [vmem:[#allocation8 + $0x90] sm:$0xff]
    %v648 = vld [vmem:[#allocation8 + $0x98] sm:$0xff]
    %v649 = vld [vmem:[#allocation8 + $0xa0] sm:$0xff]
    %v650 = vld [vmem:[#allocation8 + $0xa8] sm:$0xff]
    %v651 = vld [vmem:[#allocation8 + $0xb0] sm:$0xff]
    %v652 = vld [vmem:[#allocation8 + $0xb8] sm:$0xff]
    %v653 = vld [vmem:[#allocation8 + $0xc0] sm:$0xff]
    %v654 = vld [vmem:[#allocation8 + $0xc8] sm:$0xff]
    %v655 = vld [vmem:[#allocation8 + $0xd0] sm:$0xff]
    %v656 = vld [vmem:[#allocation8 + $0xd8] sm:$0xff]
    %v657 = vld [vmem:[#allocation8 + $0xe0] sm:$0xff]
    %v658 = vld [vmem:[#allocation8 + $0xe8] sm:$0xff]
    %v659 = vld [vmem:[#allocation8 + $0xf0] sm:$0xff]
    %v660 = vld [vmem:[#allocation8 + $0xf8] sm:$0xff]
    %v661 = vld [vmem:[%s8] sm:$0x3]
    %v663 = vperm.slane %v661, 0
    %v664 = vperm.slane %v661, 1
    %v699 = vunpack.c.l.b16 %v629
    %v700 = vunpack.c.h.b16 %v629
    %v701 = vunpack.c.l.b16 %v630
    %v702 = vunpack.c.h.b16 %v630
    %v703 = vunpack.c.l.b16 %v631
    %v704 = vunpack.c.h.b16 %v631
    %v705 = vunpack.c.l.b16 %v632
    %v706 = vunpack.c.h.b16 %v632
    %v707 = vunpack.c.l.b16 %v633
    %v708 = vunpack.c.h.b16 %v633
    %v709 = vunpack.c.l.b16 %v634
    %v710 = vunpack.c.h.b16 %v634
    %v711 = vunpack.c.l.b16 %v635
    %v712 = vunpack.c.h.b16 %v635
    %v713 = vunpack.c.l.b16 %v636
    %v714 = vunpack.c.h.b16 %v636
    %v715 = vunpack.c.l.b16 %v637
    %v716 = vunpack.c.h.b16 %v637
    %v717 = vunpack.c.l.b16 %v638
    %v718 = vunpack.c.h.b16 %v638
    %v719 = vunpack.c.l.b16 %v639
    %v720 = vunpack.c.h.b16 %v639
    %v721 = vunpack.c.l.b16 %v640
    %v722 = vunpack.c.h.b16 %v640
    %v723 = vunpack.c.l.b16 %v641
    %v724 = vunpack.c.h.b16 %v641
    %v725 = vunpack.c.l.b16 %v642
    %v726 = vunpack.c.h.b16 %v642
    %v727 = vunpack.c.l.b16 %v643
    %v728 = vunpack.c.h.b16 %v643
    %v729 = vunpack.c.l.b16 %v644
    %v730 = vunpack.c.h.b16 %v644
    %v731 = vunpack.c.l.b16 %v645
    %v732 = vunpack.c.h.b16 %v645
    %v733 = vunpack.c.l.b16 %v646
    %v734 = vunpack.c.h.b16 %v646
    %v735 = vunpack.c.l.b16 %v647
    %v736 = vunpack.c.h.b16 %v647
    %v737 = vunpack.c.l.b16 %v648
    %v738 = vunpack.c.h.b16 %v648
    %v739 = vunpack.c.l.b16 %v649
    %v740 = vunpack.c.h.b16 %v649
    %v741 = vunpack.c.l.b16 %v650
    %v742 = vunpack.c.h.b16 %v650
    %v743 = vunpack.c.l.b16 %v651
    %v744 = vunpack.c.h.b16 %v651
    %v745 = vunpack.c.l.b16 %v652
    %v746 = vunpack.c.h.b16 %v652
    %v747 = vunpack.c.l.b16 %v653
    %v748 = vunpack.c.h.b16 %v653
    %v749 = vunpack.c.l.b16 %v654
    %v750 = vunpack.c.h.b16 %v654
    %v751 = vunpack.c.l.b16 %v655
    %v752 = vunpack.c.h.b16 %v655
    %v753 = vunpack.c.l.b16 %v656
    %v754 = vunpack.c.h.b16 %v656
    %v755 = vunpack.c.l.b16 %v657
    %v756 = vunpack.c.h.b16 %v657
    %v757 = vunpack.c.l.b16 %v658
    %v758 = vunpack.c.h.b16 %v658
    %v759 = vunpack.c.l.b16 %v659
    %v760 = vunpack.c.h.b16 %v659
    %v761 = vunpack.c.l.b16 %v660
    %v762 = vunpack.c.h.b16 %v660
    %v763 = vpack.c.b16 %v701, %v699
    %v764 = vpack.c.b16 %v702, %v700
    %v765 = vpack.c.b16 %v705, %v703
    %v766 = vpack.c.b16 %v706, %v704
    %v767 = vpack.c.b16 %v709, %v707
    %v768 = vpack.c.b16 %v710, %v708
    %v769 = vpack.c.b16 %v713, %v711
    %v770 = vpack.c.b16 %v714, %v712
    %v771 = vpack.c.b16 %v717, %v715
    %v772 = vpack.c.b16 %v718, %v716
    %v773 = vpack.c.b16 %v721, %v719
    %v774 = vpack.c.b16 %v722, %v720
    %v775 = vpack.c.b16 %v725, %v723
    %v776 = vpack.c.b16 %v726, %v724
    %v777 = vpack.c.b16 %v729, %v727
    %v778 = vpack.c.b16 %v730, %v728
    %v779 = vpack.c.b16 %v733, %v731
    %v780 = vpack.c.b16 %v734, %v732
    %v781 = vpack.c.b16 %v737, %v735
    %v782 = vpack.c.b16 %v738, %v736
    %v783 = vpack.c.b16 %v741, %v739
    %v784 = vpack.c.b16 %v742, %v740
    %v785 = vpack.c.b16 %v745, %v743
    %v786 = vpack.c.b16 %v746, %v744
    %v787 = vpack.c.b16 %v749, %v747
    %v788 = vpack.c.b16 %v750, %v748
    %v789 = vpack.c.b16 %v753, %v751
    %v790 = vpack.c.b16 %v754, %v752
    %v791 = vpack.c.b16 %v757, %v755
    %v792 = vpack.c.b16 %v758, %v756
    %v793 = vpack.c.b16 %v761, %v759
    %v794 = vpack.c.b16 %v762, %v760
    %827 = vmatpush.bf16.msra.mxu0 %v777
    %828 = vmatpush.bf16.msra.mxu0 %v775
    %829 = vmatpush.bf16.msra.mxu0 %v773
    %830 = vmatpush.bf16.msra.mxu0 %v771
    %831 = vmatpush.bf16.msra.mxu0 %v769
    %832 = vmatpush.bf16.msra.mxu0 %v767
    %833 = vmatpush.bf16.msra.mxu0 %v765
    %834 = vmatpush.bf16.msra.mxu0 %v763
    %835 = vmatmul.bf16.gmra.mxu0 %v627
    %v836 = vpop.f32.mrf.mxu0
    %v837 = vadd.f32 %v663, %v836
    %v838 = vpop.f32.mrf.mxu0
    %v839 = vadd.f32 %v663, %v838
    %840 = vdwg.mxu0
    %841 = vmatpush.bf16.msra.mxu0 %v793
    %842 = vmatpush.bf16.msra.mxu0 %v791
    %843 = vmatpush.bf16.msra.mxu0 %v789
    %844 = vmatpush.bf16.msra.mxu0 %v787
    %845 = vmatpush.bf16.msra.mxu0 %v785
    %846 = vmatpush.bf16.msra.mxu0 %v783
    %847 = vmatpush.bf16.msra.mxu0 %v781
    %848 = vmatpush.bf16.msra.mxu0 %v779
    %849 = vmatmul.bf16.gmra.mxu0 %v628
    %v850 = vpop.f32.mrf.mxu0
    %v851 = vadd.f32 %v837, %v850
    %v852 = vpop.f32.mrf.mxu0
    %v853 = vadd.f32 %v839, %v852
    %854 = vdwg.mxu0
    %855 = vmatpush.bf16.msra.mxu0 %v778
    %856 = vmatpush.bf16.msra.mxu0 %v776
    %857 = vmatpush.bf16.msra.mxu0 %v774
    %858 = vmatpush.bf16.msra.mxu0 %v772
    %859 = vmatpush.bf16.msra.mxu0 %v770
    %860 = vmatpush.bf16.msra.mxu0 %v768
    %861 = vmatpush.bf16.msra.mxu0 %v766
    %862 = vmatpush.bf16.msra.mxu0 %v764
    %863 = vmatmul.bf16.gmra.mxu0 %v627
    %v864 = vpop.f32.mrf.mxu0
    %v865 = vadd.f32 %v664, %v864
    %v866 = vpop.f32.mrf.mxu0
    %v867 = vadd.f32 %v664, %v866
    %868 = vdwg.mxu0
    %869 = vmatpush.bf16.msra.mxu0 %v794
    %870 = vmatpush.bf16.msra.mxu0 %v792
    %871 = vmatpush.bf16.msra.mxu0 %v790
    %872 = vmatpush.bf16.msra.mxu0 %v788
    %873 = vmatpush.bf16.msra.mxu0 %v786
    %874 = vmatpush.bf16.msra.mxu0 %v784
    %875 = vmatpush.bf16.msra.mxu0 %v782
    %876 = vmatpush.bf16.msra.mxu0 %v780
    %877 = vmatmul.bf16.gmra.mxu0 %v628
    %v878 = vpop.f32.mrf.mxu0
    %v879 = vadd.f32 %v865, %v878
    %v880 = vpop.f32.mrf.mxu0
    %v881 = vadd.f32 %v867, %v880
    %882 = vdwg.mxu0
    %vm883 = vcmp.ge.f32.partialorder %v851, 0.0
    %vm884 = vcmp.ge.f32.partialorder %v879, 0.0
    %vm885 = vcmp.ge.f32.partialorder %v853, 0.0
    %vm886 = vcmp.ge.f32.partialorder %v881, 0.0
    %v887 = vmul.f32 %v851, 0.2
    %v888 = vmul.f32 %v879, 0.2
    %v889 = vmul.f32 %v853, 0.2
    %v890 = vmul.f32 %v881, 0.2
    %v891 = vsel %vm883, %v851, %v887
    %v892 = vsel %vm884, %v879, %v888
    %v893 = vsel %vm885, %v853, %v889
    %v894 = vsel %vm886, %v881, %v890
    %v895 = vpack.c.bf16 %v893, %v891
    %v896 = vpack.c.bf16 %v894, %v892
    %v897 = vld [vmem:[#allocation10] sm:$0xf]
    %v898 = vld [vmem:[#allocation10 + $0x4] sm:$0xf]
    %v899 = vld [vmem:[#allocation10 + $0x8] sm:$0xf]
    %v900 = vld [vmem:[#allocation10 + $0xc] sm:$0xf]
    %v901 = vld [vmem:[#allocation10 + $0x10] sm:$0xf]
    %v902 = vld [vmem:[#allocation10 + $0x14] sm:$0xf]
    %v903 = vld [vmem:[#allocation10 + $0x18] sm:$0xf]
    %v904 = vld [vmem:[#allocation10 + $0x1c] sm:$0xf]
    %v905 = vld [vmem:[#allocation10 + $0x20] sm:$0xf]
    %v906 = vld [vmem:[#allocation10 + $0x24] sm:$0xf]
    %v907 = vld [vmem:[#allocation10 + $0x28] sm:$0xf]
    %v908 = vld [vmem:[#allocation10 + $0x2c] sm:$0xf]
    %v909 = vld [vmem:[#allocation10 + $0x30] sm:$0xf]
    %v910 = vld [vmem:[#allocation10 + $0x34] sm:$0xf]
    %v911 = vld [vmem:[#allocation10 + $0x38] sm:$0xf]
    %v912 = vld [vmem:[#allocation10 + $0x3c] sm:$0xf]
    %v913 = vld [vmem:[#allocation10 + $0x40] sm:$0xf]
    %v914 = vld [vmem:[#allocation10 + $0x44] sm:$0xf]
    %v915 = vld [vmem:[#allocation10 + $0x48] sm:$0xf]
    %v916 = vld [vmem:[#allocation10 + $0x4c] sm:$0xf]
    %v917 = vld [vmem:[#allocation10 + $0x50] sm:$0xf]
    %v918 = vld [vmem:[#allocation10 + $0x54] sm:$0xf]
    %v919 = vld [vmem:[#allocation10 + $0x58] sm:$0xf]
    %v920 = vld [vmem:[#allocation10 + $0x5c] sm:$0xf]
    %v921 = vld [vmem:[#allocation10 + $0x60] sm:$0xf]
    %v922 = vld [vmem:[#allocation10 + $0x64] sm:$0xf]
    %v923 = vld [vmem:[#allocation10 + $0x68] sm:$0xf]
    %v924 = vld [vmem:[#allocation10 + $0x6c] sm:$0xf]
    %v925 = vld [vmem:[#allocation10 + $0x70] sm:$0xf]
    %v926 = vld [vmem:[#allocation10 + $0x74] sm:$0xf]
    %v927 = vld [vmem:[#allocation10 + $0x78] sm:$0xf]
    %v928 = vld [vmem:[#allocation10 + $0x7c] sm:$0xf]
    %v929 = vld [vmem:[%s10] sm:$0x1]
    %v931 = vperm.slane %v929, 0
    %v965 = vunpack.c.l.b16 %v897
    %v966 = vunpack.c.l.b16 %v898
    %v967 = vunpack.c.l.b16 %v899
    %v968 = vunpack.c.l.b16 %v900
    %v969 = vunpack.c.l.b16 %v901
    %v970 = vunpack.c.l.b16 %v902
    %v971 = vunpack.c.l.b16 %v903
    %v972 = vunpack.c.l.b16 %v904
    %v973 = vunpack.c.l.b16 %v905
    %v974 = vunpack.c.l.b16 %v906
    %v975 = vunpack.c.l.b16 %v907
    %v976 = vunpack.c.l.b16 %v908
    %v977 = vunpack.c.l.b16 %v909
    %v978 = vunpack.c.l.b16 %v910
    %v979 = vunpack.c.l.b16 %v911
    %v980 = vunpack.c.l.b16 %v912
    %v981 = vunpack.c.l.b16 %v913
    %v982 = vunpack.c.l.b16 %v914
    %v983 = vunpack.c.l.b16 %v915
    %v984 = vunpack.c.l.b16 %v916
    %v985 = vunpack.c.l.b16 %v917
    %v986 = vunpack.c.l.b16 %v918
    %v987 = vunpack.c.l.b16 %v919
    %v988 = vunpack.c.l.b16 %v920
    %v989 = vunpack.c.l.b16 %v921
    %v990 = vunpack.c.l.b16 %v922
    %v991 = vunpack.c.l.b16 %v923
    %v992 = vunpack.c.l.b16 %v924
    %v993 = vunpack.c.l.b16 %v925
    %v994 = vunpack.c.l.b16 %v926
    %v995 = vunpack.c.l.b16 %v927
    %v996 = vunpack.c.l.b16 %v928
    %v997 = vpack.c.b16 %v966, %v965
    %v998 = vpack.c.b16 %v968, %v967
    %v999 = vpack.c.b16 %v970, %v969
    %v1000 = vpack.c.b16 %v972, %v971
    %v1001 = vpack.c.b16 %v974, %v973
    %v1002 = vpack.c.b16 %v976, %v975
    %v1003 = vpack.c.b16 %v978, %v977
    %v1004 = vpack.c.b16 %v980, %v979
    %v1005 = vpack.c.b16 %v982, %v981
    %v1006 = vpack.c.b16 %v984, %v983
    %v1007 = vpack.c.b16 %v986, %v985
    %v1008 = vpack.c.b16 %v988, %v987
    %v1009 = vpack.c.b16 %v990, %v989
    %v1010 = vpack.c.b16 %v992, %v991
    %v1011 = vpack.c.b16 %v994, %v993
    %v1012 = vpack.c.b16 %v996, %v995
    %1029 = vmatpush.bf16.msra.mxu0 %v1004
    %1030 = vmatpush.bf16.msra.mxu0 %v1003
    %1031 = vmatpush.bf16.msra.mxu0 %v1002
    %1032 = vmatpush.bf16.msra.mxu0 %v1001
    %1033 = vmatpush.bf16.msra.mxu0 %v1000
    %1034 = vmatpush.bf16.msra.mxu0 %v999
    %1035 = vmatpush.bf16.msra.mxu0 %v998
    %1036 = vmatpush.bf16.msra.mxu0 %v997
    %1037 = vmatmul.bf16.gmra.mxu0 %v895
    %v1038 = vpop.f32.mrf.mxu0
    %v1039 = vadd.f32 %v931, %v1038
    %v1040 = vpop.f32.mrf.mxu0
    %v1041 = vadd.f32 %v931, %v1040
    %1042 = vdwg.mxu0
    %1043 = vmatpush.bf16.msra.mxu0 %v1012
    %1044 = vmatpush.bf16.msra.mxu0 %v1011
    %1045 = vmatpush.bf16.msra.mxu0 %v1010
    %1046 = vmatpush.bf16.msra.mxu0 %v1009
    %1047 = vmatpush.bf16.msra.mxu0 %v1008
    %1048 = vmatpush.bf16.msra.mxu0 %v1007
    %1049 = vmatpush.bf16.msra.mxu0 %v1006
    %1050 = vmatpush.bf16.msra.mxu0 %v1005
    %1051 = vmatmul.bf16.gmra.mxu0 %v896
    %v1052 = vpop.f32.mrf.mxu0
    %v1053 = vadd.f32 %v1039, %v1052
    %v1054 = vpop.f32.mrf.mxu0
    %v1055 = vadd.f32 %v1041, %v1054
    %1056 = vdwg.mxu0
    %v1057 = vtanh.pop %v1053
    %v1058 = vtanh.pop %v1055
    %1059 = vst [vmem:[#allocation11] sm:$0xff] %v1057
    %1060 = vst [vmem:[#allocation11 + $0x8] sm:$0xff] %v1058
    %s1061 = scalar_lea.vmem [#allocation2], 64
    %v1062 = vld [vmem:[%s1061] sm:$0xf]
    %v1063 = vld [vmem:[%s1061 + $0x4] sm:$0xf]
    %v1064 = vld [vmem:[%s1061 + $0x8] sm:$0xf]
    %v1065 = vld [vmem:[%s1061 + $0xc] sm:$0xf]
    %v1066 = vld [vmem:[%s1061 + $0x10] sm:$0xf]
    %v1067 = vld [vmem:[%s1061 + $0x14] sm:$0xf]
    %v1068 = vld [vmem:[%s1061 + $0x18] sm:$0xf]
    %v1069 = vld [vmem:[%s1061 + $0x1c] sm:$0xf]
    %v1070 = vld [vmem:[%s1061 + $0x20] sm:$0xf]
    %v1071 = vld [vmem:[%s1061 + $0x24] sm:$0xf]
    %v1072 = vld [vmem:[%s1061 + $0x28] sm:$0xf]
    %v1073 = vld [vmem:[%s1061 + $0x2c] sm:$0xf]
    %v1074 = vld [vmem:[%s1061 + $0x30] sm:$0xf]
    %v1075 = vld [vmem:[%s1061 + $0x34] sm:$0xf]
    %v1076 = vld [vmem:[%s1061 + $0x38] sm:$0xf]
    %v1077 = vld [vmem:[%s1061 + $0x3c] sm:$0xf]
    %s1078 = scalar_lea.vmem %s2, 1
    %v1079 = vld [vmem:[%s1078] sm:$0x1]
    %v1081 = vperm.slane %v1079, 0
    %v1099 = vunpack.c.l.b16 %v1062
    %v1100 = vunpack.c.l.b16 %v1063
    %v1101 = vunpack.c.l.b16 %v1064
    %v1102 = vunpack.c.l.b16 %v1065
    %v1103 = vunpack.c.l.b16 %v1066
    %v1104 = vunpack.c.l.b16 %v1067
    %v1105 = vunpack.c.l.b16 %v1068
    %v1106 = vunpack.c.l.b16 %v1069
    %v1107 = vunpack.c.l.b16 %v1070
    %v1108 = vunpack.c.l.b16 %v1071
    %v1109 = vunpack.c.l.b16 %v1072
    %v1110 = vunpack.c.l.b16 %v1073
    %v1111 = vunpack.c.l.b16 %v1074
    %v1112 = vunpack.c.l.b16 %v1075
    %v1113 = vunpack.c.l.b16 %v1076
    %v1114 = vunpack.c.l.b16 %v1077
    %v1115 = vpack.c.b16 %v1100, %v1099
    %v1116 = vpack.c.b16 %v1102, %v1101
    %v1117 = vpack.c.b16 %v1104, %v1103
    %v1118 = vpack.c.b16 %v1106, %v1105
    %v1119 = vpack.c.b16 %v1108, %v1107
    %v1120 = vpack.c.b16 %v1110, %v1109
    %v1121 = vpack.c.b16 %v1112, %v1111
    %v1122 = vpack.c.b16 %v1114, %v1113
    %1131 = vmatpush.bf16.msra.mxu0 %v1122
    %1132 = vmatpush.bf16.msra.mxu0 %v1121
    %1133 = vmatpush.bf16.msra.mxu0 %v1120
    %1134 = vmatpush.bf16.msra.mxu0 %v1119
    %1135 = vmatpush.bf16.msra.mxu0 %v1118
    %1136 = vmatpush.bf16.msra.mxu0 %v1117
    %1137 = vmatpush.bf16.msra.mxu0 %v1116
    %1138 = vmatpush.bf16.msra.mxu0 %v1115
    %1139 = vmatmul.bf16.gmra.mxu0 %v146
    %v1140 = vpop.f32.mrf.mxu0
    %v1141 = vadd.f32 %v1081, %v1140
    %v1142 = vpop.f32.mrf.mxu0
    %v1143 = vadd.f32 %v1081, %v1142
    %1144 = vdwg.mxu0
    %vm1145 = vcmp.ge.f32.partialorder %v1141, 0.0
    %vm1146 = vcmp.ge.f32.partialorder %v1143, 0.0
    %v1147 = vmul.f32 %v1141, 0.2
    %v1148 = vmul.f32 %v1143, 0.2
    %v1149 = vsel %vm1145, %v1141, %v1147
    %v1150 = vsel %vm1146, %v1143, %v1148
    %v1151 = vpack.c.bf16 %v1150, %v1149
    %s1152 = scalar_lea.vmem [#allocation5], 128
    %v1153 = vld [vmem:[%s1152] sm:$0xff]
    %v1154 = vld [vmem:[%s1152 + $0x8] sm:$0xff]
    %v1155 = vld [vmem:[%s1152 + $0x10] sm:$0xff]
    %v1156 = vld [vmem:[%s1152 + $0x18] sm:$0xff]
    %v1157 = vld [vmem:[%s1152 + $0x20] sm:$0xff]
    %v1158 = vld [vmem:[%s1152 + $0x28] sm:$0xff]
    %v1159 = vld [vmem:[%s1152 + $0x30] sm:$0xff]
    %v1160 = vld [vmem:[%s1152 + $0x38] sm:$0xff]
    %v1161 = vld [vmem:[%s1152 + $0x40] sm:$0xff]
    %v1162 = vld [vmem:[%s1152 + $0x48] sm:$0xff]
    %v1163 = vld [vmem:[%s1152 + $0x50] sm:$0xff]
    %v1164 = vld [vmem:[%s1152 + $0x58] sm:$0xff]
    %v1165 = vld [vmem:[%s1152 + $0x60] sm:$0xff]
    %v1166 = vld [vmem:[%s1152 + $0x68] sm:$0xff]
    %v1167 = vld [vmem:[%s1152 + $0x70] sm:$0xff]
    %v1168 = vld [vmem:[%s1152 + $0x78] sm:$0xff]
    %s1169 = scalar_lea.vmem %s4, 2
    %v1170 = vld [vmem:[%s1169] sm:$0x3]
    %v1172 = vperm.slane %v1170, 0
    %v1173 = vperm.slane %v1170, 1
    %v1192 = vunpack.c.l.b16 %v1153
    %v1193 = vunpack.c.h.b16 %v1153
    %v1194 = vunpack.c.l.b16 %v1154
    %v1195 = vunpack.c.h.b16 %v1154
    %v1196 = vunpack.c.l.b16 %v1155
    %v1197 = vunpack.c.h.b16 %v1155
    %v1198 = vunpack.c.l.b16 %v1156
    %v1199 = vunpack.c.h.b16 %v1156
    %v1200 = vunpack.c.l.b16 %v1157
    %v1201 = vunpack.c.h.b16 %v1157
    %v1202 = vunpack.c.l.b16 %v1158
    %v1203 = vunpack.c.h.b16 %v1158
    %v1204 = vunpack.c.l.b16 %v1159
    %v1205 = vunpack.c.h.b16 %v1159
    %v1206 = vunpack.c.l.b16 %v1160
    %v1207 = vunpack.c.h.b16 %v1160
    %v1208 = vunpack.c.l.b16 %v1161
    %v1209 = vunpack.c.h.b16 %v1161
    %v1210 = vunpack.c.l.b16 %v1162
    %v1211 = vunpack.c.h.b16 %v1162
    %v1212 = vunpack.c.l.b16 %v1163
    %v1213 = vunpack.c.h.b16 %v1163
    %v1214 = vunpack.c.l.b16 %v1164
    %v1215 = vunpack.c.h.b16 %v1164
    %v1216 = vunpack.c.l.b16 %v1165
    %v1217 = vunpack.c.h.b16 %v1165
    %v1218 = vunpack.c.l.b16 %v1166
    %v1219 = vunpack.c.h.b16 %v1166
    %v1220 = vunpack.c.l.b16 %v1167
    %v1221 = vunpack.c.h.b16 %v1167
    %v1222 = vunpack.c.l.b16 %v1168
    %v1223 = vunpack.c.h.b16 %v1168
    %v1224 = vpack.c.b16 %v1194, %v1192
    %v1225 = vpack.c.b16 %v1195, %v1193
    %v1226 = vpack.c.b16 %v1198, %v1196
    %v1227 = vpack.c.b16 %v1199, %v1197
    %v1228 = vpack.c.b16 %v1202, %v1200
    %v1229 = vpack.c.b16 %v1203, %v1201
    %v1230 = vpack.c.b16 %v1206, %v1204
    %v1231 = vpack.c.b16 %v1207, %v1205
    %v1232 = vpack.c.b16 %v1210, %v1208
    %v1233 = vpack.c.b16 %v1211, %v1209
    %v1234 = vpack.c.b16 %v1214, %v1212
    %v1235 = vpack.c.b16 %v1215, %v1213
    %v1236 = vpack.c.b16 %v1218, %v1216
    %v1237 = vpack.c.b16 %v1219, %v1217
    %v1238 = vpack.c.b16 %v1222, %v1220
    %v1239 = vpack.c.b16 %v1223, %v1221
    %1256 = vmatpush.bf16.msra.mxu0 %v1238
    %1257 = vmatpush.bf16.msra.mxu0 %v1236
    %1258 = vmatpush.bf16.msra.mxu0 %v1234
    %1259 = vmatpush.bf16.msra.mxu0 %v1232
    %1260 = vmatpush.bf16.msra.mxu0 %v1230
    %1261 = vmatpush.bf16.msra.mxu0 %v1228
    %1262 = vmatpush.bf16.msra.mxu0 %v1226
    %1263 = vmatpush.bf16.msra.mxu0 %v1224
    %1264 = vmatmul.bf16.gmra.mxu0 %v1151
    %v1265 = vpop.f32.mrf.mxu0
    %v1266 = vadd.f32 %v1172, %v1265
    %v1267 = vpop.f32.mrf.mxu0
    %v1268 = vadd.f32 %v1172, %v1267
    %1269 = vdwg.mxu0
    %1270 = vmatpush.bf16.msra.mxu0 %v1239
    %1271 = vmatpush.bf16.msra.mxu0 %v1237
    %1272 = vmatpush.bf16.msra.mxu0 %v1235
    %1273 = vmatpush.bf16.msra.mxu0 %v1233
    %1274 = vmatpush.bf16.msra.mxu0 %v1231
    %1275 = vmatpush.bf16.msra.mxu0 %v1229
    %1276 = vmatpush.bf16.msra.mxu0 %v1227
    %1277 = vmatpush.bf16.msra.mxu0 %v1225
    %1278 = vmatmul.bf16.gmra.mxu0 %v1151
    %v1279 = vpop.f32.mrf.mxu0
    %v1280 = vadd.f32 %v1173, %v1279
    %v1281 = vpop.f32.mrf.mxu0
    %v1282 = vadd.f32 %v1173, %v1281
    %1283 = vdwg.mxu0
    %vm1284 = vcmp.ge.f32.partialorder %v1266, 0.0
    %vm1285 = vcmp.ge.f32.partialorder %v1280, 0.0
    %vm1286 = vcmp.ge.f32.partialorder %v1268, 0.0
    %vm1287 = vcmp.ge.f32.partialorder %v1282, 0.0
    %v1288 = vmul.f32 %v1266, 0.2
    %v1289 = vmul.f32 %v1280, 0.2
    %v1290 = vmul.f32 %v1268, 0.2
    %v1291 = vmul.f32 %v1282, 0.2
    %v1292 = vsel %vm1284, %v1266, %v1288
    %v1293 = vsel %vm1285, %v1280, %v1289
    %v1294 = vsel %vm1286, %v1268, %v1290
    %v1295 = vsel %vm1287, %v1282, %v1291
    %v1296 = vpack.c.bf16 %v1294, %v1292
    %v1297 = vpack.c.bf16 %v1295, %v1293
    %s1298 = scalar_lea.vmem [#allocation7], 256
    %v1299 = vld [vmem:[%s1298] sm:$0xff]
    %v1300 = vld [vmem:[%s1298 + $0x8] sm:$0xff]
    %v1301 = vld [vmem:[%s1298 + $0x10] sm:$0xff]
    %v1302 = vld [vmem:[%s1298 + $0x18] sm:$0xff]
    %v1303 = vld [vmem:[%s1298 + $0x20] sm:$0xff]
    %v1304 = vld [vmem:[%s1298 + $0x28] sm:$0xff]
    %v1305 = vld [vmem:[%s1298 + $0x30] sm:$0xff]
    %v1306 = vld [vmem:[%s1298 + $0x38] sm:$0xff]
    %v1307 = vld [vmem:[%s1298 + $0x40] sm:$0xff]
    %v1308 = vld [vmem:[%s1298 + $0x48] sm:$0xff]
    %v1309 = vld [vmem:[%s1298 + $0x50] sm:$0xff]
    %v1310 = vld [vmem:[%s1298 + $0x58] sm:$0xff]
    %v1311 = vld [vmem:[%s1298 + $0x60] sm:$0xff]
    %v1312 = vld [vmem:[%s1298 + $0x68] sm:$0xff]
    %v1313 = vld [vmem:[%s1298 + $0x70] sm:$0xff]
    %v1314 = vld [vmem:[%s1298 + $0x78] sm:$0xff]
    %v1315 = vld [vmem:[%s1298 + $0x80] sm:$0xff]
    %v1316 = vld [vmem:[%s1298 + $0x88] sm:$0xff]
    %v1317 = vld [vmem:[%s1298 + $0x90] sm:$0xff]
    %v1318 = vld [vmem:[%s1298 + $0x98] sm:$0xff]
    %v1319 = vld [vmem:[%s1298 + $0xa0] sm:$0xff]
    %v1320 = vld [vmem:[%s1298 + $0xa8] sm:$0xff]
    %v1321 = vld [vmem:[%s1298 + $0xb0] sm:$0xff]
    %v1322 = vld [vmem:[%s1298 + $0xb8] sm:$0xff]
    %v1323 = vld [vmem:[%s1298 + $0xc0] sm:$0xff]
    %v1324 = vld [vmem:[%s1298 + $0xc8] sm:$0xff]
    %v1325 = vld [vmem:[%s1298 + $0xd0] sm:$0xff]
    %v1326 = vld [vmem:[%s1298 + $0xd8] sm:$0xff]
    %v1327 = vld [vmem:[%s1298 + $0xe0] sm:$0xff]
    %v1328 = vld [vmem:[%s1298 + $0xe8] sm:$0xff]
    %v1329 = vld [vmem:[%s1298 + $0xf0] sm:$0xff]
    %v1330 = vld [vmem:[%s1298 + $0xf8] sm:$0xff]
    %s1331 = scalar_lea.vmem %s6, 2
    %v1332 = vld [vmem:[%s1331] sm:$0x3]
    %v1334 = vperm.slane %v1332, 0
    %v1335 = vperm.slane %v1332, 1
    %v1370 = vunpack.c.l.b16 %v1299
    %v1371 = vunpack.c.h.b16 %v1299
    %v1372 = vunpack.c.l.b16 %v1300
    %v1373 = vunpack.c.h.b16 %v1300
    %v1374 = vunpack.c.l.b16 %v1301
    %v1375 = vunpack.c.h.b16 %v1301
    %v1376 = vunpack.c.l.b16 %v1302
    %v1377 = vunpack.c.h.b16 %v1302
    %v1378 = vunpack.c.l.b16 %v1303
    %v1379 = vunpack.c.h.b16 %v1303
    %v1380 = vunpack.c.l.b16 %v1304
    %v1381 = vunpack.c.h.b16 %v1304
    %v1382 = vunpack.c.l.b16 %v1305
    %v1383 = vunpack.c.h.b16 %v1305
    %v1384 = vunpack.c.l.b16 %v1306
    %v1385 = vunpack.c.h.b16 %v1306
    %v1386 = vunpack.c.l.b16 %v1307
    %v1387 = vunpack.c.h.b16 %v1307
    %v1388 = vunpack.c.l.b16 %v1308
    %v1389 = vunpack.c.h.b16 %v1308
    %v1390 = vunpack.c.l.b16 %v1309
    %v1391 = vunpack.c.h.b16 %v1309
    %v1392 = vunpack.c.l.b16 %v1310
    %v1393 = vunpack.c.h.b16 %v1310
    %v1394 = vunpack.c.l.b16 %v1311
    %v1395 = vunpack.c.h.b16 %v1311
    %v1396 = vunpack.c.l.b16 %v1312
    %v1397 = vunpack.c.h.b16 %v1312
    %v1398 = vunpack.c.l.b16 %v1313
    %v1399 = vunpack.c.h.b16 %v1313
    %v1400 = vunpack.c.l.b16 %v1314
    %v1401 = vunpack.c.h.b16 %v1314
    %v1402 = vunpack.c.l.b16 %v1315
    %v1403 = vunpack.c.h.b16 %v1315
    %v1404 = vunpack.c.l.b16 %v1316
    %v1405 = vunpack.c.h.b16 %v1316
    %v1406 = vunpack.c.l.b16 %v1317
    %v1407 = vunpack.c.h.b16 %v1317
    %v1408 = vunpack.c.l.b16 %v1318
    %v1409 = vunpack.c.h.b16 %v1318
    %v1410 = vunpack.c.l.b16 %v1319
    %v1411 = vunpack.c.h.b16 %v1319
    %v1412 = vunpack.c.l.b16 %v1320
    %v1413 = vunpack.c.h.b16 %v1320
    %v1414 = vunpack.c.l.b16 %v1321
    %v1415 = vunpack.c.h.b16 %v1321
    %v1416 = vunpack.c.l.b16 %v1322
    %v1417 = vunpack.c.h.b16 %v1322
    %v1418 = vunpack.c.l.b16 %v1323
    %v1419 = vunpack.c.h.b16 %v1323
    %v1420 = vunpack.c.l.b16 %v1324
    %v1421 = vunpack.c.h.b16 %v1324
    %v1422 = vunpack.c.l.b16 %v1325
    %v1423 = vunpack.c.h.b16 %v1325
    %v1424 = vunpack.c.l.b16 %v1326
    %v1425 = vunpack.c.h.b16 %v1326
    %v1426 = vunpack.c.l.b16 %v1327
    %v1427 = vunpack.c.h.b16 %v1327
    %v1428 = vunpack.c.l.b16 %v1328
    %v1429 = vunpack.c.h.b16 %v1328
    %v1430 = vunpack.c.l.b16 %v1329
    %v1431 = vunpack.c.h.b16 %v1329
    %v1432 = vunpack.c.l.b16 %v1330
    %v1433 = vunpack.c.h.b16 %v1330
    %v1434 = vpack.c.b16 %v1372, %v1370
    %v1435 = vpack.c.b16 %v1373, %v1371
    %v1436 = vpack.c.b16 %v1376, %v1374
    %v1437 = vpack.c.b16 %v1377, %v1375
    %v1438 = vpack.c.b16 %v1380, %v1378
    %v1439 = vpack.c.b16 %v1381, %v1379
    %v1440 = vpack.c.b16 %v1384, %v1382
    %v1441 = vpack.c.b16 %v1385, %v1383
    %v1442 = vpack.c.b16 %v1388, %v1386
    %v1443 = vpack.c.b16 %v1389, %v1387
    %v1444 = vpack.c.b16 %v1392, %v1390
    %v1445 = vpack.c.b16 %v1393, %v1391
    %v1446 = vpack.c.b16 %v1396, %v1394
    %v1447 = vpack.c.b16 %v1397, %v1395
    %v1448 = vpack.c.b16 %v1400, %v1398
    %v1449 = vpack.c.b16 %v1401, %v1399
    %v1450 = vpack.c.b16 %v1404, %v1402
    %v1451 = vpack.c.b16 %v1405, %v1403
    %v1452 = vpack.c.b16 %v1408, %v1406
    %v1453 = vpack.c.b16 %v1409, %v1407
    %v1454 = vpack.c.b16 %v1412, %v1410
    %v1455 = vpack.c.b16 %v1413, %v1411
    %v1456 = vpack.c.b16 %v1416, %v1414
    %v1457 = vpack.c.b16 %v1417, %v1415
    %v1458 = vpack.c.b16 %v1420, %v1418
    %v1459 = vpack.c.b16 %v1421, %v1419
    %v1460 = vpack.c.b16 %v1424, %v1422
    %v1461 = vpack.c.b16 %v1425, %v1423
    %v1462 = vpack.c.b16 %v1428, %v1426
    %v1463 = vpack.c.b16 %v1429, %v1427
    %v1464 = vpack.c.b16 %v1432, %v1430
    %v1465 = vpack.c.b16 %v1433, %v1431
    %1498 = vmatpush.bf16.msra.mxu0 %v1448
    %1499 = vmatpush.bf16.msra.mxu0 %v1446
    %1500 = vmatpush.bf16.msra.mxu0 %v1444
    %1501 = vmatpush.bf16.msra.mxu0 %v1442
    %1502 = vmatpush.bf16.msra.mxu0 %v1440
    %1503 = vmatpush.bf16.msra.mxu0 %v1438
    %1504 = vmatpush.bf16.msra.mxu0 %v1436
    %1505 = vmatpush.bf16.msra.mxu0 %v1434
    %1506 = vmatmul.bf16.gmra.mxu0 %v1296
    %v1507 = vpop.f32.mrf.mxu0
    %v1508 = vadd.f32 %v1334, %v1507
    %v1509 = vpop.f32.mrf.mxu0
    %v1510 = vadd.f32 %v1334, %v1509
    %1511 = vdwg.mxu0
    %1512 = vmatpush.bf16.msra.mxu0 %v1464
    %1513 = vmatpush.bf16.msra.mxu0 %v1462
    %1514 = vmatpush.bf16.msra.mxu0 %v1460
    %1515 = vmatpush.bf16.msra.mxu0 %v1458
    %1516 = vmatpush.bf16.msra.mxu0 %v1456
    %1517 = vmatpush.bf16.msra.mxu0 %v1454
    %1518 = vmatpush.bf16.msra.mxu0 %v1452
    %1519 = vmatpush.bf16.msra.mxu0 %v1450
    %1520 = vmatmul.bf16.gmra.mxu0 %v1297
    %v1521 = vpop.f32.mrf.mxu0
    %v1522 = vadd.f32 %v1508, %v1521
    %v1523 = vpop.f32.mrf.mxu0
    %v1524 = vadd.f32 %v1510, %v1523
    %1525 = vdwg.mxu0
    %1526 = vmatpush.bf16.msra.mxu0 %v1449
    %1527 = vmatpush.bf16.msra.mxu0 %v1447
    %1528 = vmatpush.bf16.msra.mxu0 %v1445
    %1529 = vmatpush.bf16.msra.mxu0 %v1443
    %1530 = vmatpush.bf16.msra.mxu0 %v1441
    %1531 = vmatpush.bf16.msra.mxu0 %v1439
    %1532 = vmatpush.bf16.msra.mxu0 %v1437
    %1533 = vmatpush.bf16.msra.mxu0 %v1435
    %1534 = vmatmul.bf16.gmra.mxu0 %v1296
    %v1535 = vpop.f32.mrf.mxu0
    %v1536 = vadd.f32 %v1335, %v1535
    %v1537 = vpop.f32.mrf.mxu0
    %v1538 = vadd.f32 %v1335, %v1537
    %1539 = vdwg.mxu0
    %1540 = vmatpush.bf16.msra.mxu0 %v1465
    %1541 = vmatpush.bf16.msra.mxu0 %v1463
    %1542 = vmatpush.bf16.msra.mxu0 %v1461
    %1543 = vmatpush.bf16.msra.mxu0 %v1459
    %1544 = vmatpush.bf16.msra.mxu0 %v1457
    %1545 = vmatpush.bf16.msra.mxu0 %v1455
    %1546 = vmatpush.bf16.msra.mxu0 %v1453
    %1547 = vmatpush.bf16.msra.mxu0 %v1451
    %1548 = vmatmul.bf16.gmra.mxu0 %v1297
    %v1549 = vpop.f32.mrf.mxu0
    %v1550 = vadd.f32 %v1536, %v1549
    %v1551 = vpop.f32.mrf.mxu0
    %v1552 = vadd.f32 %v1538, %v1551
    %1553 = vdwg.mxu0
    %vm1554 = vcmp.ge.f32.partialorder %v1522, 0.0
    %vm1555 = vcmp.ge.f32.partialorder %v1550, 0.0
    %vm1556 = vcmp.ge.f32.partialorder %v1524, 0.0
    %vm1557 = vcmp.ge.f32.partialorder %v1552, 0.0
    %v1558 = vmul.f32 %v1522, 0.2
    %v1559 = vmul.f32 %v1550, 0.2
    %v1560 = vmul.f32 %v1524, 0.2
    %v1561 = vmul.f32 %v1552, 0.2
    %v1562 = vsel %vm1554, %v1522, %v1558
    %v1563 = vsel %vm1555, %v1550, %v1559
    %v1564 = vsel %vm1556, %v1524, %v1560
    %v1565 = vsel %vm1557, %v1552, %v1561
    %v1566 = vpack.c.bf16 %v1564, %v1562
    %v1567 = vpack.c.bf16 %v1565, %v1563
    %s1568 = scalar_lea.vmem [#allocation8], 256
    %v1569 = vld [vmem:[%s1568] sm:$0xff]
    %v1570 = vld [vmem:[%s1568 + $0x8] sm:$0xff]
    %v1571 = vld [vmem:[%s1568 + $0x10] sm:$0xff]
    %v1572 = vld [vmem:[%s1568 + $0x18] sm:$0xff]
    %v1573 = vld [vmem:[%s1568 + $0x20] sm:$0xff]
    %v1574 = vld [vmem:[%s1568 + $0x28] sm:$0xff]
    %v1575 = vld [vmem:[%s1568 + $0x30] sm:$0xff]
    %v1576 = vld [vmem:[%s1568 + $0x38] sm:$0xff]
    %v1577 = vld [vmem:[%s1568 + $0x40] sm:$0xff]
    %v1578 = vld [vmem:[%s1568 + $0x48] sm:$0xff]
    %v1579 = vld [vmem:[%s1568 + $0x50] sm:$0xff]
    %v1580 = vld [vmem:[%s1568 + $0x58] sm:$0xff]
    %v1581 = vld [vmem:[%s1568 + $0x60] sm:$0xff]
    %v1582 = vld [vmem:[%s1568 + $0x68] sm:$0xff]
    %v1583 = vld [vmem:[%s1568 + $0x70] sm:$0xff]
    %v1584 = vld [vmem:[%s1568 + $0x78] sm:$0xff]
    %v1585 = vld [vmem:[%s1568 + $0x80] sm:$0xff]
    %v1586 = vld [vmem:[%s1568 + $0x88] sm:$0xff]
    %v1587 = vld [vmem:[%s1568 + $0x90] sm:$0xff]
    %v1588 = vld [vmem:[%s1568 + $0x98] sm:$0xff]
    %v1589 = vld [vmem:[%s1568 + $0xa0] sm:$0xff]
    %v1590 = vld [vmem:[%s1568 + $0xa8] sm:$0xff]
    %v1591 = vld [vmem:[%s1568 + $0xb0] sm:$0xff]
    %v1592 = vld [vmem:[%s1568 + $0xb8] sm:$0xff]
    %v1593 = vld [vmem:[%s1568 + $0xc0] sm:$0xff]
    %v1594 = vld [vmem:[%s1568 + $0xc8] sm:$0xff]
    %v1595 = vld [vmem:[%s1568 + $0xd0] sm:$0xff]
    %v1596 = vld [vmem:[%s1568 + $0xd8] sm:$0xff]
    %v1597 = vld [vmem:[%s1568 + $0xe0] sm:$0xff]
    %v1598 = vld [vmem:[%s1568 + $0xe8] sm:$0xff]
    %v1599 = vld [vmem:[%s1568 + $0xf0] sm:$0xff]
    %v1600 = vld [vmem:[%s1568 + $0xf8] sm:$0xff]
    %s1601 = scalar_lea.vmem %s8, 2
    %v1602 = vld [vmem:[%s1601] sm:$0x3]
    %v1604 = vperm.slane %v1602, 0
    %v1605 = vperm.slane %v1602, 1
    %v1640 = vunpack.c.l.b16 %v1569
    %v1641 = vunpack.c.h.b16 %v1569
    %v1642 = vunpack.c.l.b16 %v1570
    %v1643 = vunpack.c.h.b16 %v1570
    %v1644 = vunpack.c.l.b16 %v1571
    %v1645 = vunpack.c.h.b16 %v1571
    %v1646 = vunpack.c.l.b16 %v1572
    %v1647 = vunpack.c.h.b16 %v1572
    %v1648 = vunpack.c.l.b16 %v1573
    %v1649 = vunpack.c.h.b16 %v1573
    %v1650 = vunpack.c.l.b16 %v1574
    %v1651 = vunpack.c.h.b16 %v1574
    %v1652 = vunpack.c.l.b16 %v1575
    %v1653 = vunpack.c.h.b16 %v1575
    %v1654 = vunpack.c.l.b16 %v1576
    %v1655 = vunpack.c.h.b16 %v1576
    %v1656 = vunpack.c.l.b16 %v1577
    %v1657 = vunpack.c.h.b16 %v1577
    %v1658 = vunpack.c.l.b16 %v1578
    %v1659 = vunpack.c.h.b16 %v1578
    %v1660 = vunpack.c.l.b16 %v1579
    %v1661 = vunpack.c.h.b16 %v1579
    %v1662 = vunpack.c.l.b16 %v1580
    %v1663 = vunpack.c.h.b16 %v1580
    %v1664 = vunpack.c.l.b16 %v1581
    %v1665 = vunpack.c.h.b16 %v1581
    %v1666 = vunpack.c.l.b16 %v1582
    %v1667 = vunpack.c.h.b16 %v1582
    %v1668 = vunpack.c.l.b16 %v1583
    %v1669 = vunpack.c.h.b16 %v1583
    %v1670 = vunpack.c.l.b16 %v1584
    %v1671 = vunpack.c.h.b16 %v1584
    %v1672 = vunpack.c.l.b16 %v1585
    %v1673 = vunpack.c.h.b16 %v1585
    %v1674 = vunpack.c.l.b16 %v1586
    %v1675 = vunpack.c.h.b16 %v1586
    %v1676 = vunpack.c.l.b16 %v1587
    %v1677 = vunpack.c.h.b16 %v1587
    %v1678 = vunpack.c.l.b16 %v1588
    %v1679 = vunpack.c.h.b16 %v1588
    %v1680 = vunpack.c.l.b16 %v1589
    %v1681 = vunpack.c.h.b16 %v1589
    %v1682 = vunpack.c.l.b16 %v1590
    %v1683 = vunpack.c.h.b16 %v1590
    %v1684 = vunpack.c.l.b16 %v1591
    %v1685 = vunpack.c.h.b16 %v1591
    %v1686 = vunpack.c.l.b16 %v1592
    %v1687 = vunpack.c.h.b16 %v1592
    %v1688 = vunpack.c.l.b16 %v1593
    %v1689 = vunpack.c.h.b16 %v1593
    %v1690 = vunpack.c.l.b16 %v1594
    %v1691 = vunpack.c.h.b16 %v1594
    %v1692 = vunpack.c.l.b16 %v1595
    %v1693 = vunpack.c.h.b16 %v1595
    %v1694 = vunpack.c.l.b16 %v1596
    %v1695 = vunpack.c.h.b16 %v1596
    %v1696 = vunpack.c.l.b16 %v1597
    %v1697 = vunpack.c.h.b16 %v1597
    %v1698 = vunpack.c.l.b16 %v1598
    %v1699 = vunpack.c.h.b16 %v1598
    %v1700 = vunpack.c.l.b16 %v1599
    %v1701 = vunpack.c.h.b16 %v1599
    %v1702 = vunpack.c.l.b16 %v1600
    %v1703 = vunpack.c.h.b16 %v1600
    %v1704 = vpack.c.b16 %v1642, %v1640
    %v1705 = vpack.c.b16 %v1643, %v1641
    %v1706 = vpack.c.b16 %v1646, %v1644
    %v1707 = vpack.c.b16 %v1647, %v1645
    %v1708 = vpack.c.b16 %v1650, %v1648
    %v1709 = vpack.c.b16 %v1651, %v1649
    %v1710 = vpack.c.b16 %v1654, %v1652
    %v1711 = vpack.c.b16 %v1655, %v1653
    %v1712 = vpack.c.b16 %v1658, %v1656
    %v1713 = vpack.c.b16 %v1659, %v1657
    %v1714 = vpack.c.b16 %v1662, %v1660
    %v1715 = vpack.c.b16 %v1663, %v1661
    %v1716 = vpack.c.b16 %v1666, %v1664
    %v1717 = vpack.c.b16 %v1667, %v1665
    %v1718 = vpack.c.b16 %v1670, %v1668
    %v1719 = vpack.c.b16 %v1671, %v1669
    %v1720 = vpack.c.b16 %v1674, %v1672
    %v1721 = vpack.c.b16 %v1675, %v1673
    %v1722 = vpack.c.b16 %v1678, %v1676
    %v1723 = vpack.c.b16 %v1679, %v1677
    %v1724 = vpack.c.b16 %v1682, %v1680
    %v1725 = vpack.c.b16 %v1683, %v1681
    %v1726 = vpack.c.b16 %v1686, %v1684
    %v1727 = vpack.c.b16 %v1687, %v1685
    %v1728 = vpack.c.b16 %v1690, %v1688
    %v1729 = vpack.c.b16 %v1691, %v1689
    %v1730 = vpack.c.b16 %v1694, %v1692
    %v1731 = vpack.c.b16 %v1695, %v1693
    %v1732 = vpack.c.b16 %v1698, %v1696
    %v1733 = vpack.c.b16 %v1699, %v1697
    %v1734 = vpack.c.b16 %v1702, %v1700
    %v1735 = vpack.c.b16 %v1703, %v1701
    %1768 = vmatpush.bf16.msra.mxu0 %v1718
    %1769 = vmatpush.bf16.msra.mxu0 %v1716
    %1770 = vmatpush.bf16.msra.mxu0 %v1714
    %1771 = vmatpush.bf16.msra.mxu0 %v1712
    %1772 = vmatpush.bf16.msra.mxu0 %v1710
    %1773 = vmatpush.bf16.msra.mxu0 %v1708
    %1774 = vmatpush.bf16.msra.mxu0 %v1706
    %1775 = vmatpush.bf16.msra.mxu0 %v1704
    %1776 = vmatmul.bf16.gmra.mxu0 %v1566
    %v1777 = vpop.f32.mrf.mxu0
    %v1778 = vadd.f32 %v1604, %v1777
    %v1779 = vpop.f32.mrf.mxu0
    %v1780 = vadd.f32 %v1604, %v1779
    %1781 = vdwg.mxu0
    %1782 = vmatpush.bf16.msra.mxu0 %v1734
    %1783 = vmatpush.bf16.msra.mxu0 %v1732
    %1784 = vmatpush.bf16.msra.mxu0 %v1730
    %1785 = vmatpush.bf16.msra.mxu0 %v1728
    %1786 = vmatpush.bf16.msra.mxu0 %v1726
    %1787 = vmatpush.bf16.msra.mxu0 %v1724
    %1788 = vmatpush.bf16.msra.mxu0 %v1722
    %1789 = vmatpush.bf16.msra.mxu0 %v1720
    %1790 = vmatmul.bf16.gmra.mxu0 %v1567
    %v1791 = vpop.f32.mrf.mxu0
    %v1792 = vadd.f32 %v1778, %v1791
    %v1793 = vpop.f32.mrf.mxu0
    %v1794 = vadd.f32 %v1780, %v1793
    %1795 = vdwg.mxu0
    %1796 = vmatpush.bf16.msra.mxu0 %v1719
    %1797 = vmatpush.bf16.msra.mxu0 %v1717
    %1798 = vmatpush.bf16.msra.mxu0 %v1715
    %1799 = vmatpush.bf16.msra.mxu0 %v1713
    %1800 = vmatpush.bf16.msra.mxu0 %v1711
    %1801 = vmatpush.bf16.msra.mxu0 %v1709
    %1802 = vmatpush.bf16.msra.mxu0 %v1707
    %1803 = vmatpush.bf16.msra.mxu0 %v1705
    %1804 = vmatmul.bf16.gmra.mxu0 %v1566
    %v1805 = vpop.f32.mrf.mxu0
    %v1806 = vadd.f32 %v1605, %v1805
    %v1807 = vpop.f32.mrf.mxu0
    %v1808 = vadd.f32 %v1605, %v1807
    %1809 = vdwg.mxu0
    %1810 = vmatpush.bf16.msra.mxu0 %v1735
    %1811 = vmatpush.bf16.msra.mxu0 %v1733
    %1812 = vmatpush.bf16.msra.mxu0 %v1731
    %1813 = vmatpush.bf16.msra.mxu0 %v1729
    %1814 = vmatpush.bf16.msra.mxu0 %v1727
    %1815 = vmatpush.bf16.msra.mxu0 %v1725
    %1816 = vmatpush.bf16.msra.mxu0 %v1723
    %1817 = vmatpush.bf16.msra.mxu0 %v1721
    %1818 = vmatmul.bf16.gmra.mxu0 %v1567
    %v1819 = vpop.f32.mrf.mxu0
    %v1820 = vadd.f32 %v1806, %v1819
    %v1821 = vpop.f32.mrf.mxu0
    %v1822 = vadd.f32 %v1808, %v1821
    %1823 = vdwg.mxu0
    %vm1824 = vcmp.ge.f32.partialorder %v1792, 0.0
    %vm1825 = vcmp.ge.f32.partialorder %v1820, 0.0
    %vm1826 = vcmp.ge.f32.partialorder %v1794, 0.0
    %vm1827 = vcmp.ge.f32.partialorder %v1822, 0.0
    %v1828 = vmul.f32 %v1792, 0.2
    %v1829 = vmul.f32 %v1820, 0.2
    %v1830 = vmul.f32 %v1794, 0.2
    %v1831 = vmul.f32 %v1822, 0.2
    %v1832 = vsel %vm1824, %v1792, %v1828
    %v1833 = vsel %vm1825, %v1820, %v1829
    %v1834 = vsel %vm1826, %v1794, %v1830
    %v1835 = vsel %vm1827, %v1822, %v1831
    %v1836 = vpack.c.bf16 %v1834, %v1832
    %v1837 = vpack.c.bf16 %v1835, %v1833
    %s1838 = scalar_lea.vmem [#allocation10], 128
    %v1839 = vld [vmem:[%s1838] sm:$0xf]
    %v1840 = vld [vmem:[%s1838 + $0x4] sm:$0xf]
    %v1841 = vld [vmem:[%s1838 + $0x8] sm:$0xf]
    %v1842 = vld [vmem:[%s1838 + $0xc] sm:$0xf]
    %v1843 = vld [vmem:[%s1838 + $0x10] sm:$0xf]
    %v1844 = vld [vmem:[%s1838 + $0x14] sm:$0xf]
    %v1845 = vld [vmem:[%s1838 + $0x18] sm:$0xf]
    %v1846 = vld [vmem:[%s1838 + $0x1c] sm:$0xf]
    %v1847 = vld [vmem:[%s1838 + $0x20] sm:$0xf]
    %v1848 = vld [vmem:[%s1838 + $0x24] sm:$0xf]
    %v1849 = vld [vmem:[%s1838 + $0x28] sm:$0xf]
    %v1850 = vld [vmem:[%s1838 + $0x2c] sm:$0xf]
    %v1851 = vld [vmem:[%s1838 + $0x30] sm:$0xf]
    %v1852 = vld [vmem:[%s1838 + $0x34] sm:$0xf]
    %v1853 = vld [vmem:[%s1838 + $0x38] sm:$0xf]
    %v1854 = vld [vmem:[%s1838 + $0x3c] sm:$0xf]
    %v1855 = vld [vmem:[%s1838 + $0x40] sm:$0xf]
    %v1856 = vld [vmem:[%s1838 + $0x44] sm:$0xf]
    %v1857 = vld [vmem:[%s1838 + $0x48] sm:$0xf]
    %v1858 = vld [vmem:[%s1838 + $0x4c] sm:$0xf]
    %v1859 = vld [vmem:[%s1838 + $0x50] sm:$0xf]
    %v1860 = vld [vmem:[%s1838 + $0x54] sm:$0xf]
    %v1861 = vld [vmem:[%s1838 + $0x58] sm:$0xf]
    %v1862 = vld [vmem:[%s1838 + $0x5c] sm:$0xf]
    %v1863 = vld [vmem:[%s1838 + $0x60] sm:$0xf]
    %v1864 = vld [vmem:[%s1838 + $0x64] sm:$0xf]
    %v1865 = vld [vmem:[%s1838 + $0x68] sm:$0xf]
    %v1866 = vld [vmem:[%s1838 + $0x6c] sm:$0xf]
    %v1867 = vld [vmem:[%s1838 + $0x70] sm:$0xf]
    %v1868 = vld [vmem:[%s1838 + $0x74] sm:$0xf]
    %v1869 = vld [vmem:[%s1838 + $0x78] sm:$0xf]
    %v1870 = vld [vmem:[%s1838 + $0x7c] sm:$0xf]
    %s1871 = scalar_lea.vmem %s10, 1
    %v1872 = vld [vmem:[%s1871] sm:$0x1]
    %v1874 = vperm.slane %v1872, 0
    %v1908 = vunpack.c.l.b16 %v1839
    %v1909 = vunpack.c.l.b16 %v1840
    %v1910 = vunpack.c.l.b16 %v1841
    %v1911 = vunpack.c.l.b16 %v1842
    %v1912 = vunpack.c.l.b16 %v1843
    %v1913 = vunpack.c.l.b16 %v1844
    %v1914 = vunpack.c.l.b16 %v1845
    %v1915 = vunpack.c.l.b16 %v1846
    %v1916 = vunpack.c.l.b16 %v1847
    %v1917 = vunpack.c.l.b16 %v1848
    %v1918 = vunpack.c.l.b16 %v1849
    %v1919 = vunpack.c.l.b16 %v1850
    %v1920 = vunpack.c.l.b16 %v1851
    %v1921 = vunpack.c.l.b16 %v1852
    %v1922 = vunpack.c.l.b16 %v1853
    %v1923 = vunpack.c.l.b16 %v1854
    %v1924 = vunpack.c.l.b16 %v1855
    %v1925 = vunpack.c.l.b16 %v1856
    %v1926 = vunpack.c.l.b16 %v1857
    %v1927 = vunpack.c.l.b16 %v1858
    %v1928 = vunpack.c.l.b16 %v1859
    %v1929 = vunpack.c.l.b16 %v1860
    %v1930 = vunpack.c.l.b16 %v1861
    %v1931 = vunpack.c.l.b16 %v1862
    %v1932 = vunpack.c.l.b16 %v1863
    %v1933 = vunpack.c.l.b16 %v1864
    %v1934 = vunpack.c.l.b16 %v1865
    %v1935 = vunpack.c.l.b16 %v1866
    %v1936 = vunpack.c.l.b16 %v1867
    %v1937 = vunpack.c.l.b16 %v1868
    %v1938 = vunpack.c.l.b16 %v1869
    %v1939 = vunpack.c.l.b16 %v1870
    %v1940 = vpack.c.b16 %v1909, %v1908
    %v1941 = vpack.c.b16 %v1911, %v1910
    %v1942 = vpack.c.b16 %v1913, %v1912
    %v1943 = vpack.c.b16 %v1915, %v1914
    %v1944 = vpack.c.b16 %v1917, %v1916
    %v1945 = vpack.c.b16 %v1919, %v1918
    %v1946 = vpack.c.b16 %v1921, %v1920
    %v1947 = vpack.c.b16 %v1923, %v1922
    %v1948 = vpack.c.b16 %v1925, %v1924
    %v1949 = vpack.c.b16 %v1927, %v1926
    %v1950 = vpack.c.b16 %v1929, %v1928
    %v1951 = vpack.c.b16 %v1931, %v1930
    %v1952 = vpack.c.b16 %v1933, %v1932
    %v1953 = vpack.c.b16 %v1935, %v1934
    %v1954 = vpack.c.b16 %v1937, %v1936
    %v1955 = vpack.c.b16 %v1939, %v1938
    %1972 = vmatpush.bf16.msra.mxu0 %v1947
    %1973 = vmatpush.bf16.msra.mxu0 %v1946
    %1974 = vmatpush.bf16.msra.mxu0 %v1945
    %1975 = vmatpush.bf16.msra.mxu0 %v1944
    %1976 = vmatpush.bf16.msra.mxu0 %v1943
    %1977 = vmatpush.bf16.msra.mxu0 %v1942
    %1978 = vmatpush.bf16.msra.mxu0 %v1941
    %1979 = vmatpush.bf16.msra.mxu0 %v1940
    %1980 = vmatmul.bf16.gmra.mxu0 %v1836
    %v1981 = vpop.f32.mrf.mxu0
    %v1982 = vadd.f32 %v1874, %v1981
    %v1983 = vpop.f32.mrf.mxu0
    %v1984 = vadd.f32 %v1874, %v1983
    %1985 = vdwg.mxu0
    %1986 = vmatpush.bf16.msra.mxu0 %v1955
    %1987 = vmatpush.bf16.msra.mxu0 %v1954
    %1988 = vmatpush.bf16.msra.mxu0 %v1953
    %1989 = vmatpush.bf16.msra.mxu0 %v1952
    %1990 = vmatpush.bf16.msra.mxu0 %v1951
    %1991 = vmatpush.bf16.msra.mxu0 %v1950
    %1992 = vmatpush.bf16.msra.mxu0 %v1949
    %1993 = vmatpush.bf16.msra.mxu0 %v1948
    %1994 = vmatmul.bf16.gmra.mxu0 %v1837
    %v1995 = vpop.f32.mrf.mxu0
    %v1996 = vadd.f32 %v1982, %v1995
    %v1997 = vpop.f32.mrf.mxu0
    %v1998 = vadd.f32 %v1984, %v1997
    %1999 = vdwg.mxu0
    %v2000 = vtanh.pop %v1996
    %v2001 = vtanh.pop %v1998
    %2002 = vst [vmem:[#allocation12] sm:$0xff] %v2000
    %2003 = vst [vmem:[#allocation12 + $0x8] sm:$0xff] %v2001
    // Predicated region
    $region66: #{_decx_forward_jit.1} parent=1 // pred_check
      _
    $region67: #{_decx_forward_jit.1} parent=1 // pred_check_branch
      %2005 = sbr.rel (0) target = $region69
    $region68: #{_decx_forward_jit.1} parent=1 // pred_region
      %2007 = vsyncadd [#allocation4], 0
      %s2008 = sshll.u32 [#allocation11], 4
      %s2009 = int_to_ptr.vmem [resolvable:$true] %s2008
      %s2010 = sshll.u32 %s11, 4
      %s2011 = int_to_ptr.hbm [resolvable:$true] %s2010
      %2016 = dma.vmem_to_hbm [thread:$0]  %s2009, 256, %s2011, [#allocation4], 128, 128, 8
    $region69: #{_decx_forward_jit.1} parent=1 // pred_fallthru
      _
    // Predicated region
    $region70: #{_decx_forward_jit.1} parent=1 // pred_check
      _
    $region71: #{_decx_forward_jit.1} parent=1 // pred_check_branch
      %2018 = sbr.rel (0) target = $region73
    $region72: #{_decx_forward_jit.1} parent=1 // pred_region
      %2020 = vsyncadd [#allocation13], 0
      %s2021 = sshll.u32 [#allocation12], 4
      %s2022 = int_to_ptr.vmem [resolvable:$true] %s2021
      %s2023 = sshll.u32 %s12, 4
      %s2024 = int_to_ptr.hbm [resolvable:$true] %s2023
      %2029 = dma.vmem_to_hbm [thread:$0]  %s2022, 256, %s2024, [#allocation13], 128, 128, 8
    $region73: #{_decx_forward_jit.1} parent=1 // pred_fallthru
      _
    // Predicated region
    $region74: #{_decx_forward_jit.1} parent=1 // pred_check
      _
    $region75: #{_decx_forward_jit.1} parent=1 // pred_check_branch
      %2031 = sbr.rel (0) target = $region77
    $region76: #{_decx_forward_jit.1} parent=1 // pred_region
      %2033 = dma.done [#allocation4], 256
    $region77: #{_decx_forward_jit.1} parent=1 // pred_fallthru
      _
    // Predicated region
    $region78: #{_decx_forward_jit.1} parent=1 // pred_check
      _
    $region79: #{_decx_forward_jit.1} parent=1 // pred_check_branch
      %2035 = sbr.rel (0) target = $region81
    $region80: #{_decx_forward_jit.1} parent=1 // pred_region
      %2037 = dma.done [#allocation13], 256
    $region81: #{_decx_forward_jit.1} parent=1 // pred_fallthru
      _
    %2038 = vsyncpa [#allocation3], 1
    %2039 = vsyncpa [#allocation6], 1
    %2040 = vsyncpa [#allocation9], 1
    %2041 = vsyncpa [#allocation4], 1
    %2042 = vsyncpa [#allocation13], 1

</llo_original>
